<compile_context>
chip_gen: v5e
topology: v5e:2x2
jax: 0.10.0
libtpu: 0.0.40
codegen_flags: <defaults>
</compile_context>

<pallas_src>
import jax
import jax.numpy as jnp
from jax.experimental import pallas as pl
from jax.experimental.pallas import tpu as pltpu

_LANE = 128
_SUBLANE = 8


def _round_up(x, m):
    return ((x + m - 1) // m) * m


def _vmem_cap_bytes():
    """Per-generation VMEM cap with ~25% headroom (v7x ~48 MiB, v5e/v6e ~96 MiB)."""
    try:
        cap = int(pltpu.get_tpu_info().vmem_capacity_bytes)
    except Exception:
        cap = 64 << 20
    return max(16 << 20, (cap * 3) // 4)


def _pick_row_tile(H, w_pad, cout_p, requested=None, acc_budget_bytes=128 << 10):
    """Largest divisor of H whose f32 accumulator (t*w_pad, cout_p) fits the budget.

    Budget is capped at 128 KiB so the value-carried accumulator stays within a
    fraction of the 64-vreg file (review item: avoid per-tap VMEM spills).
    Falls back to row_tile=1 if even a single row exceeds the budget (still correct).
    """
    if requested is not None and H % requested == 0:
        return requested
    max_rows = max(w_pad, acc_budget_bytes // (cout_p * 4))
    cands = [t for t in range(1, H + 1) if H % t == 0 and t * w_pad <= max_rows]
    return max(cands) if cands else 1


def _make_aspp_kernel(dilations, maxd, w_pad, rows):
    """Build the kernel with static tap offsets closed over."""
    taps = []  # (dilation index, row offset in the padded-row coordinate) per (d, ki)
    for d_idx, d in enumerate(dilations):
        for ki in range(3):
            taps.append((d_idx, maxd + (ki - 1) * d))

    def kernel(x_ref, w_ref, b_ref, o_ref):
        # x_ref: (nd, Hp*w_pad, 3*Cin)  column-shift-folded image, resident across row
        #                               tiles (its index map ignores the row axis).
        # w_ref: (3*nd, 3*Cin, cout_p)  folded tap weights (1x1 conv already applied).
        # b_ref: (1, cout_p)            folded bias (f32).
        # o_ref: (rows, cout_p)         lane-dense output tile, rows = row_tile*w_pad.
        r = pl.program_id(1)
        row_base = pl.multiple_of(r * rows, rows)

        # Accumulate in vregs only (rows*cout_p*4 <= 128 KiB by construction).
        acc = jnp.zeros((rows, o_ref.shape[-1]), jnp.float32)

        # Static unrolled loop over the 3*nd row taps: each tap is one 2-D MXU
        # matmul with K = 3*Cin, on a sublane-aligned row window (no reshapes,
        # no unaligned width slices).
        for t, (d_idx, r0) in enumerate(taps):
            start = pl.multiple_of(row_base + r0 * w_pad, _SUBLANE)
            lhs = x_ref[d_idx, pl.ds(start, rows), :]          # (rows, 3*Cin)
            acc = acc + jnp.dot(lhs, w_ref[t],
                                preferred_element_type=jnp.float32)

        o_ref[...] = (acc + b_ref[...]).astype(o_ref.dtype)

    return kernel


def aspp_share_pallas(x_nchw, w_oihw, b, w1_oihw, b1, dilations, *,
                      row_tile=None, compute_dtype=jnp.bfloat16):
    """Pallas implementation of ASPP_share.forward.

    Args:
      x_nchw:  (B, Cin, H, W) float32
      w_oihw:  (Cout, Cin, 3, 3) shared 3x3 conv weight
      b:       (Cout,)           shared 3x3 conv bias
      w1_oihw: (Cout, len(dilations)*Cout, 1, 1) 1x1 conv weight
      b1:      (Cout,)           1x1 conv bias
      row_tile: output rows computed per grid step (None = auto)
      compute_dtype: matmul operand dtype (accumulation is always f32).  bf16
        operands round the *folded* f32 weights; use float32 for tight accuracy.
    Returns:
      (B, Cout, H, W) float32
    """
    B, Cin, H, W = x_nchw.shape
    Cout = w_oihw.shape[0]
    nd = len(dilations)
    maxd = max(dilations)
    n_taps = 3 * nd
    K3 = 3 * Cin

    # ---- Fold the 1x1 conv into the shared 3x3 taps (f32 precompute). ----
    w_k = jnp.transpose(w_oihw, (2, 3, 1, 0)).astype(jnp.float32)            # (3,3,Cin,Cb)
    w1_k = jnp.transpose(w1_oihw[:, :, 0, 0], (1, 0)).astype(jnp.float32)
    w1_k = w1_k.reshape(nd, Cout, Cout)                                      # (nd,Cb,Cout)
    w_eff = jnp.einsum("ijcb,dbo->dijco", w_k, w1_k)                         # (nd,3,3,Cin,Cout)
    b_eff = b1.astype(jnp.float32) + jnp.einsum(
        "b,dbo->o", b.astype(jnp.float32), w1_k)                             # (Cout,)

    # ---- Pad output channels to a full 128-lane tile (lane-dense stores). ----
    cout_p = _round_up(Cout, _LANE)
    w_eff = jnp.pad(w_eff, ((0, 0),) * 4 + ((0, cout_p - Cout),))
    # Fold kj into the contraction axis: K index = kj*Cin + c, tap index = d*3 + ki.
    w_tap = w_eff.reshape(nd, 3, K3, cout_p).reshape(n_taps, K3, cout_p)
    w_tap = w_tap.astype(compute_dtype)
    b_eff2d = jnp.pad(b_eff, (0, cout_p - Cout)).reshape(1, cout_p)

    # ---- NCHW -> NHWC, pad spatially by maxd, fold the kj column shifts into the
    #      channel axis (per dilation), pad W to a multiple of 8 and flatten (H, W)
    #      so every in-kernel slice is a sublane-aligned, purely row-wise window. ----
    x_nhwc = jnp.transpose(x_nchw, (0, 2, 3, 1))
    x_pad = jnp.pad(x_nhwc, ((0, 0), (maxd, maxd), (maxd, maxd), (0, 0)))
    Hp = H + 2 * maxd
    per_dil = []
    for d in dilations:
        cols = [x_pad[:, :, maxd + (kj - 1) * d: maxd + (kj - 1) * d + W, :]
                for kj in range(3)]
        per_dil.append(jnp.concatenate(cols, axis=-1))                       # (B,Hp,W,3*Cin)
    x_sh = jnp.stack(per_dil, axis=1)                                        # (B,nd,Hp,W,3*Cin)
    w_pad_ = _round_up(W, _SUBLANE)
    if w_pad_ != W:
        x_sh = jnp.pad(x_sh, ((0, 0), (0, 0), (0, 0), (0, w_pad_ - W), (0, 0)))
    x_flat = x_sh.reshape(B, nd, Hp * w_pad_, K3).astype(compute_dtype)

    # ---- Tiling: grid = (batch, row tiles), both parallel. ----
    row_tile = _pick_row_tile(H, w_pad_, cout_p, requested=row_tile)
    n_row = H // row_tile
    rows = row_tile * w_pad_

    kernel = _make_aspp_kernel(tuple(dilations), maxd, w_pad_, rows)

    # Explicit VMEM budget (image block auto-double-buffered, weights, output, bias).
    isz = jnp.dtype(compute_dtype).itemsize
    vmem_need = (2 * nd * Hp * w_pad_ * K3 * isz
                 + 2 * n_taps * K3 * cout_p * isz
                 + 2 * rows * cout_p * 4
                 + 2 * cout_p * 4
                 + (2 << 20))
    vmem_limit = int(min(max(vmem_need, 16 << 20), _vmem_cap_bytes()))

    cost = pl.CostEstimate(
        flops=2 * B * H * w_pad_ * n_taps * K3 * cout_p,
        transcendentals=0,
        bytes_accessed=int(x_flat.size * isz + w_tap.size * isz
                           + b_eff2d.size * 4 + B * H * w_pad_ * cout_p * 4))

    out2d = pl.pallas_call(
        kernel,
        out_shape=jax.ShapeDtypeStruct((B, H * w_pad_, cout_p), jnp.float32),
        grid=(B, n_row),
        in_specs=[
            # Folded, column-shifted image: index map ignores the row axis, so the
            # block stays resident across row tiles (fetched once per batch element).
            pl.BlockSpec((None, nd, Hp * w_pad_, K3),
                         lambda bi, r: (bi, 0, 0, 0)),
            # Folded tap weights / bias stay resident for the whole grid.
            pl.BlockSpec((n_taps, K3, cout_p), lambda bi, r: (0, 0, 0)),
            pl.BlockSpec((1, cout_p), lambda bi, r: (0, 0)),
        ],
        out_specs=pl.BlockSpec((None, rows, cout_p), lambda bi, r: (bi, r, 0)),
        compiler_params=pltpu.CompilerParams(
            dimension_semantics=("parallel", "parallel"),
            vmem_limit_bytes=vmem_limit),
        cost_estimate=cost,
    )(x_flat, w_tap, b_eff2d)

    out = out2d.reshape(B, H, w_pad_, cout_p)[:, :, :W, :Cout]
    return jnp.transpose(out, (0, 3, 1, 2))   # back to NCHW


def aspp_share_reference(x, w, b, w1, b1, dilations):
    """Pure-JAX reference matching the PyTorch forward exactly (NCHW)."""
    outs = []
    for d in dilations:
        y = jax.lax.conv_general_dilated(
            x, w, window_strides=(1, 1), padding=[(d, d), (d, d)],
            rhs_dilation=(d, d),
            dimension_numbers=("NCHW", "OIHW", "NCHW"))
        outs.append(y + b[None, :, None, None])
    cat = jnp.concatenate(outs, axis=1)
    y = jax.lax.conv_general_dilated(
        cat, w1, window_strides=(1, 1), padding=[(0, 0), (0, 0)],
        dimension_numbers=("NCHW", "OIHW", "NCHW"))
    return y + b1[None, :, None, None]


if __name__ == "__main__":
    # Small shapes consistent with the module.
    B, Cin, H, W = 2, 4, 16, 16
    channels = 8
    dilations = (1, 2, 4)

    key = jax.random.PRNGKey(0)
    kx, kw, kb, kw1, kb1 = jax.random.split(key, 5)

    x = jax.random.normal(kx, (B, Cin, H, W), jnp.float32)
    # shared_conv = ConvModule(in_channels, channels, 3): weight (Cout, Cin, 3, 3), bias (Cout,)
    w = jax.random.normal(kw, (channels, Cin, 3, 3), jnp.float32) * 0.1
    b = jax.random.normal(kb, (channels,), jnp.float32) * 0.1
    # conv1x1 = nn.Conv2d(len(dilations)*channels, channels, 1)
    w1 = jax.random.normal(kw1, (channels, len(dilations) * channels, 1, 1),
                           jnp.float32) * 0.1
    b1 = jax.random.normal(kb1, (channels,), jnp.float32) * 0.1

    ref = aspp_share_reference(x, w, b, w1, b1, dilations)

    # f32 operands, explicit row_tile=8 (exercises the multi-row-tile grid: 2x2 steps).
    out = aspp_share_pallas(x, w, b, w1, b1, dilations, row_tile=8,
                            compute_dtype=jnp.float32)
    out = jax.block_until_ready(out)
    assert out.shape == (B, channels, H, W)
    assert jnp.allclose(out, ref, atol=1e-4, rtol=1e-4), (
        float(jnp.max(jnp.abs(out - ref))))

    # Default path: bf16 operands / f32 MXU accumulation, auto row tiling.
    out_bf16 = aspp_share_pallas(x, w, b, w1, b1, dilations)
    out_bf16 = jax.block_until_ready(out_bf16)
    assert out_bf16.shape == (B, channels, H, W)
    assert jnp.allclose(out_bf16, ref, atol=5e-2, rtol=5e-2), (
        float(jnp.max(jnp.abs(out_bf16 - ref))))

    print("KERNEL_OK")
</pallas_src>

<mosaic_0001>
module attributes {stable_mosaic.version = 11 : i64} {
  func.func @kernel(%arg0: i32, %arg1: i32, %arg2: memref<1x3x384x12xf32, #tpu.memory_space<vmem>>, %arg3: memref<9x12x128xf32, #tpu.memory_space<vmem>>, %arg4: memref<1x128xf32, #tpu.memory_space<vmem>>, %arg5: memref<1x128x128xf32, #tpu.memory_space<vmem>>) attributes {dimension_semantics = [#tpu.dimension_semantics<parallel>, #tpu.dimension_semantics<parallel>], iteration_bounds = array<i64: 2, 2>, scalar_prefetch = 0 : i64, scratch_operands = 0 : i64, tpu.core_type = #tpu.core_type<tc>, window_params = [{transform_indices = @transform_0, window_bounds = array<i64: 1, 3, 384, 12>}, {pipeline_mode = #tpu.pipeline_mode<synchronous>, transform_indices = @transform_1, window_bounds = array<i64: 9, 12, 128>}, {pipeline_mode = #tpu.pipeline_mode<synchronous>, transform_indices = @transform_2, window_bounds = array<i64: 1, 128>}, {transform_indices = @transform_3, window_bounds = array<i64: 1, 128, 128>}]} {
    %c128_i32 = arith.constant 128 : i32
    %0 = arith.muli %arg1, %c128_i32 : i32
    %1 = tpu.assume_multiple %0, 128 : i32
    %cst = arith.constant 0.000000e+00 : f32
    %2 = vector.broadcast %cst : f32 to vector<128x128xf32>
    %c48_i32 = arith.constant 48 : i32
    %3 = arith.addi %1, %c48_i32 : i32
    %4 = tpu.assume_multiple %3, 8 : i32
    %c0 = arith.constant 0 : index
    %c0_0 = arith.constant 0 : index
    %5 = arith.index_cast %4 : i32 to index
    %c0_1 = arith.constant 0 : index
    %6 = vector.load %arg2[%c0, %c0_0, %5, %c0_1] : memref<1x3x384x12xf32, #tpu.memory_space<vmem>>, vector<1x1x128x12xf32>
    %7 = vector.shape_cast %6 : vector<1x1x128x12xf32> to vector<128x12xf32>
    %c0_2 = arith.constant 0 : index
    %c0_3 = arith.constant 0 : index
    %c0_4 = arith.constant 0 : index
    %8 = vector.load %arg3[%c0_2, %c0_3, %c0_4] : memref<9x12x128xf32, #tpu.memory_space<vmem>>, vector<1x12x128xf32>
    %9 = vector.shape_cast %8 : vector<1x12x128xf32> to vector<12x128xf32>
    %cst_5 = arith.constant dense<0.000000e+00> : vector<128x128xf32>
    %10 = tpu.matmul %7, %9, %cst_5 {dimension_numbers = #tpu.dot_dimension_numbers<[1], [0], [0], [1], [0, 0, 1, 1], [], []>} : vector<128x12xf32>, vector<12x128xf32>, vector<128x128xf32> -> vector<128x128xf32>
    %11 = arith.addf %2, %10 : vector<128x128xf32>
    %c64_i32 = arith.constant 64 : i32
    %12 = arith.addi %1, %c64_i32 : i32
    %13 = tpu.assume_multiple %12, 8 : i32
    %c0_6 = arith.constant 0 : index
    %c0_7 = arith.constant 0 : index
    %14 = arith.index_cast %13 : i32 to index
    %c0_8 = arith.constant 0 : index
    %15 = vector.load %arg2[%c0_6, %c0_7, %14, %c0_8] : memref<1x3x384x12xf32, #tpu.memory_space<vmem>>, vector<1x1x128x12xf32>
    %16 = vector.shape_cast %15 : vector<1x1x128x12xf32> to vector<128x12xf32>
    %c1 = arith.constant 1 : index
    %c0_9 = arith.constant 0 : index
    %c0_10 = arith.constant 0 : index
    %17 = vector.load %arg3[%c1, %c0_9, %c0_10] : memref<9x12x128xf32, #tpu.memory_space<vmem>>, vector<1x12x128xf32>
    %18 = vector.shape_cast %17 : vector<1x12x128xf32> to vector<12x128xf32>
    %cst_11 = arith.constant dense<0.000000e+00> : vector<128x128xf32>
    %19 = tpu.matmul %16, %18, %cst_11 {dimension_numbers = #tpu.dot_dimension_numbers<[1], [0], [0], [1], [0, 0, 1, 1], [], []>} : vector<128x12xf32>, vector<12x128xf32>, vector<128x128xf32> -> vector<128x128xf32>
    %20 = arith.addf %11, %19 : vector<128x128xf32>
    %c80_i32 = arith.constant 80 : i32
    %21 = arith.addi %1, %c80_i32 : i32
    %22 = tpu.assume_multiple %21, 8 : i32
    %c0_12 = arith.constant 0 : index
    %c0_13 = arith.constant 0 : index
    %23 = arith.index_cast %22 : i32 to index
    %c0_14 = arith.constant 0 : index
    %24 = vector.load %arg2[%c0_12, %c0_13, %23, %c0_14] : memref<1x3x384x12xf32, #tpu.memory_space<vmem>>, vector<1x1x128x12xf32>
    %25 = vector.shape_cast %24 : vector<1x1x128x12xf32> to vector<128x12xf32>
    %c2 = arith.constant 2 : index
    %c0_15 = arith.constant 0 : index
    %c0_16 = arith.constant 0 : index
    %26 = vector.load %arg3[%c2, %c0_15, %c0_16] : memref<9x12x128xf32, #tpu.memory_space<vmem>>, vector<1x12x128xf32>
    %27 = vector.shape_cast %26 : vector<1x12x128xf32> to vector<12x128xf32>
    %cst_17 = arith.constant dense<0.000000e+00> : vector<128x128xf32>
    %28 = tpu.matmul %25, %27, %cst_17 {dimension_numbers = #tpu.dot_dimension_numbers<[1], [0], [0], [1], [0, 0, 1, 1], [], []>} : vector<128x12xf32>, vector<12x128xf32>, vector<128x128xf32> -> vector<128x128xf32>
    %29 = arith.addf %20, %28 : vector<128x128xf32>
    %c32_i32 = arith.constant 32 : i32
    %30 = arith.addi %1, %c32_i32 : i32
    %31 = tpu.assume_multiple %30, 8 : i32
    %c0_18 = arith.constant 0 : index
    %c1_19 = arith.constant 1 : index
    %32 = arith.index_cast %31 : i32 to index
    %c0_20 = arith.constant 0 : index
    %33 = vector.load %arg2[%c0_18, %c1_19, %32, %c0_20] : memref<1x3x384x12xf32, #tpu.memory_space<vmem>>, vector<1x1x128x12xf32>
    %34 = vector.shape_cast %33 : vector<1x1x128x12xf32> to vector<128x12xf32>
    %c3 = arith.constant 3 : index
    %c0_21 = arith.constant 0 : index
    %c0_22 = arith.constant 0 : index
    %35 = vector.load %arg3[%c3, %c0_21, %c0_22] : memref<9x12x128xf32, #tpu.memory_space<vmem>>, vector<1x12x128xf32>
    %36 = vector.shape_cast %35 : vector<1x12x128xf32> to vector<12x128xf32>
    %cst_23 = arith.constant dense<0.000000e+00> : vector<128x128xf32>
    %37 = tpu.matmul %34, %36, %cst_23 {dimension_numbers = #tpu.dot_dimension_numbers<[1], [0], [0], [1], [0, 0, 1, 1], [], []>} : vector<128x12xf32>, vector<12x128xf32>, vector<128x128xf32> -> vector<128x128xf32>
    %38 = arith.addf %29, %37 : vector<128x128xf32>
    %c64_i32_24 = arith.constant 64 : i32
    %39 = arith.addi %1, %c64_i32_24 : i32
    %40 = tpu.assume_multiple %39, 8 : i32
    %c0_25 = arith.constant 0 : index
    %c1_26 = arith.constant 1 : index
    %41 = arith.index_cast %40 : i32 to index
    %c0_27 = arith.constant 0 : index
    %42 = vector.load %arg2[%c0_25, %c1_26, %41, %c0_27] : memref<1x3x384x12xf32, #tpu.memory_space<vmem>>, vector<1x1x128x12xf32>
    %43 = vector.shape_cast %42 : vector<1x1x128x12xf32> to vector<128x12xf32>
    %c4 = arith.constant 4 : index
    %c0_28 = arith.constant 0 : index
    %c0_29 = arith.constant 0 : index
    %44 = vector.load %arg3[%c4, %c0_28, %c0_29] : memref<9x12x128xf32, #tpu.memory_space<vmem>>, vector<1x12x128xf32>
    %45 = vector.shape_cast %44 : vector<1x12x128xf32> to vector<12x128xf32>
    %cst_30 = arith.constant dense<0.000000e+00> : vector<128x128xf32>
    %46 = tpu.matmul %43, %45, %cst_30 {dimension_numbers = #tpu.dot_dimension_numbers<[1], [0], [0], [1], [0, 0, 1, 1], [], []>} : vector<128x12xf32>, vector<12x128xf32>, vector<128x128xf32> -> vector<128x128xf32>
    %47 = arith.addf %38, %46 : vector<128x128xf32>
    %c96_i32 = arith.constant 96 : i32
    %48 = arith.addi %1, %c96_i32 : i32
    %49 = tpu.assume_multiple %48, 8 : i32
    %c0_31 = arith.constant 0 : index
    %c1_32 = arith.constant 1 : index
    %50 = arith.index_cast %49 : i32 to index
    %c0_33 = arith.constant 0 : index
    %51 = vector.load %arg2[%c0_31, %c1_32, %50, %c0_33] : memref<1x3x384x12xf32, #tpu.memory_space<vmem>>, vector<1x1x128x12xf32>
    %52 = vector.shape_cast %51 : vector<1x1x128x12xf32> to vector<128x12xf32>
    %c5 = arith.constant 5 : index
    %c0_34 = arith.constant 0 : index
    %c0_35 = arith.constant 0 : index
    %53 = vector.load %arg3[%c5, %c0_34, %c0_35] : memref<9x12x128xf32, #tpu.memory_space<vmem>>, vector<1x12x128xf32>
    %54 = vector.shape_cast %53 : vector<1x12x128xf32> to vector<12x128xf32>
    %cst_36 = arith.constant dense<0.000000e+00> : vector<128x128xf32>
    %55 = tpu.matmul %52, %54, %cst_36 {dimension_numbers = #tpu.dot_dimension_numbers<[1], [0], [0], [1], [0, 0, 1, 1], [], []>} : vector<128x12xf32>, vector<12x128xf32>, vector<128x128xf32> -> vector<128x128xf32>
    %56 = arith.addf %47, %55 : vector<128x128xf32>
    %c0_i32 = arith.constant 0 : i32
    %57 = arith.addi %1, %c0_i32 : i32
    %58 = tpu.assume_multiple %57, 8 : i32
    %c0_37 = arith.constant 0 : index
    %c2_38 = arith.constant 2 : index
    %59 = arith.index_cast %58 : i32 to index
    %c0_39 = arith.constant 0 : index
    %60 = vector.load %arg2[%c0_37, %c2_38, %59, %c0_39] : memref<1x3x384x12xf32, #tpu.memory_space<vmem>>, vector<1x1x128x12xf32>
    %61 = vector.shape_cast %60 : vector<1x1x128x12xf32> to vector<128x12xf32>
    %c6 = arith.constant 6 : index
    %c0_40 = arith.constant 0 : index
    %c0_41 = arith.constant 0 : index
    %62 = vector.load %arg3[%c6, %c0_40, %c0_41] : memref<9x12x128xf32, #tpu.memory_space<vmem>>, vector<1x12x128xf32>
    %63 = vector.shape_cast %62 : vector<1x12x128xf32> to vector<12x128xf32>
    %cst_42 = arith.constant dense<0.000000e+00> : vector<128x128xf32>
    %64 = tpu.matmul %61, %63, %cst_42 {dimension_numbers = #tpu.dot_dimension_numbers<[1], [0], [0], [1], [0, 0, 1, 1], [], []>} : vector<128x12xf32>, vector<12x128xf32>, vector<128x128xf32> -> vector<128x128xf32>
    %65 = arith.addf %56, %64 : vector<128x128xf32>
    %c64_i32_43 = arith.constant 64 : i32
    %66 = arith.addi %1, %c64_i32_43 : i32
    %67 = tpu.assume_multiple %66, 8 : i32
    %c0_44 = arith.constant 0 : index
    %c2_45 = arith.constant 2 : index
    %68 = arith.index_cast %67 : i32 to index
    %c0_46 = arith.constant 0 : index
    %69 = vector.load %arg2[%c0_44, %c2_45, %68, %c0_46] : memref<1x3x384x12xf32, #tpu.memory_space<vmem>>, vector<1x1x128x12xf32>
    %70 = vector.shape_cast %69 : vector<1x1x128x12xf32> to vector<128x12xf32>
    %c7 = arith.constant 7 : index
    %c0_47 = arith.constant 0 : index
    %c0_48 = arith.constant 0 : index
    %71 = vector.load %arg3[%c7, %c0_47, %c0_48] : memref<9x12x128xf32, #tpu.memory_space<vmem>>, vector<1x12x128xf32>
    %72 = vector.shape_cast %71 : vector<1x12x128xf32> to vector<12x128xf32>
    %cst_49 = arith.constant dense<0.000000e+00> : vector<128x128xf32>
    %73 = tpu.matmul %70, %72, %cst_49 {dimension_numbers = #tpu.dot_dimension_numbers<[1], [0], [0], [1], [0, 0, 1, 1], [], []>} : vector<128x12xf32>, vector<12x128xf32>, vector<128x128xf32> -> vector<128x128xf32>
    %74 = arith.addf %65, %73 : vector<128x128xf32>
    %c128_i32_50 = arith.constant 128 : i32
    %75 = arith.addi %1, %c128_i32_50 : i32
    %76 = tpu.assume_multiple %75, 8 : i32
    %c0_51 = arith.constant 0 : index
    %c2_52 = arith.constant 2 : index
    %77 = arith.index_cast %76 : i32 to index
    %c0_53 = arith.constant 0 : index
    %78 = vector.load %arg2[%c0_51, %c2_52, %77, %c0_53] : memref<1x3x384x12xf32, #tpu.memory_space<vmem>>, vector<1x1x128x12xf32>
    %79 = vector.shape_cast %78 : vector<1x1x128x12xf32> to vector<128x12xf32>
    %c8 = arith.constant 8 : index
    %c0_54 = arith.constant 0 : index
    %c0_55 = arith.constant 0 : index
    %80 = vector.load %arg3[%c8, %c0_54, %c0_55] : memref<9x12x128xf32, #tpu.memory_space<vmem>>, vector<1x12x128xf32>
    %81 = vector.shape_cast %80 : vector<1x12x128xf32> to vector<12x128xf32>
    %cst_56 = arith.constant dense<0.000000e+00> : vector<128x128xf32>
    %82 = tpu.matmul %79, %81, %cst_56 {dimension_numbers = #tpu.dot_dimension_numbers<[1], [0], [0], [1], [0, 0, 1, 1], [], []>} : vector<128x12xf32>, vector<12x128xf32>, vector<128x128xf32> -> vector<128x128xf32>
    %83 = arith.addf %74, %82 : vector<128x128xf32>
    %c0_57 = arith.constant 0 : index
    %c0_58 = arith.constant 0 : index
    %84 = vector.load %arg4[%c0_57, %c0_58] : memref<1x128xf32, #tpu.memory_space<vmem>>, vector<1x128xf32>
    %85 = vector.broadcast %84 : vector<1x128xf32> to vector<128x128xf32>
    %86 = arith.addf %83, %85 : vector<128x128xf32>
    %c0_59 = arith.constant 0 : index
    %c0_60 = arith.constant 0 : index
    %c0_61 = arith.constant 0 : index
    %87 = vector.load %arg5[%c0_59, %c0_60, %c0_61] : memref<1x128x128xf32, #tpu.memory_space<vmem>>, vector<1x128x128xf32>
    %88 = vector.shape_cast %87 : vector<1x128x128xf32> to vector<128x128xf32>
    %89 = vector.shape_cast %86 : vector<128x128xf32> to vector<1x128x128xf32>
    tpu.vector_store %arg5[%c0_59, %c0_60, %c0_61], %89 {strides = array<i32>} : memref<1x128x128xf32, #tpu.memory_space<vmem>>, vector<1x128x128xf32>,
    return
  }
  func.func @transform_0(%arg0: i32, %arg1: i32) -> (i32, i32, i32, i32) {
    %c0_i32 = arith.constant 0 : i32
    %c0_i32_0 = arith.constant 0 : i32
    %c0_i32_1 = arith.constant 0 : i32
    %c0_i32_2 = arith.constant 0 : i32
    return %arg0, %c0_i32, %c0_i32_0, %c0_i32_1 : i32, i32, i32, i32
  }
  func.func @transform_1(%arg0: i32, %arg1: i32) -> (i32, i32, i32) {
    %c0_i32 = arith.constant 0 : i32
    %c0_i32_0 = arith.constant 0 : i32
    %c0_i32_1 = arith.constant 0 : i32
    %c0_i32_2 = arith.constant 0 : i32
    return %c0_i32, %c0_i32_0, %c0_i32_1 : i32, i32, i32
  }
  func.func @transform_2(%arg0: i32, %arg1: i32) -> (i32, i32) {
    %c0_i32 = arith.constant 0 : i32
    %c0_i32_0 = arith.constant 0 : i32
    %c0_i32_1 = arith.constant 0 : i32
    return %c0_i32, %c0_i32_0 : i32, i32
  }
  func.func @transform_3(%arg0: i32, %arg1: i32) -> (i32, i32, i32) {
    %c0_i32 = arith.constant 0 : i32
    %c0_i32_0 = arith.constant 0 : i32
    return %arg0, %arg1, %c0_i32 : i32, i32, i32
  }
}

</mosaic_0001>

<llo_original>
// kernel: tpu_custom_call.1
$region0: #{tpu_custom_call.1}
  #allocation0 [shape = 'u32[]', space=smem, size = 0x4, offset = 0x4, fixed_abs, tag = 'smem constant byte address 0x4 - core index']
  #allocation1 [shape = 'u32[72,128]{1,0:T(1,128)}', space=vmem, size = 0x9000, scoped, tag = 'internal scratch']
  %s0 = inlined_call_operand.vmem [shape: f32[2,3,384,12], index: 0, kind: input, shape index: {}]
  %s1 = inlined_call_operand.vmem [shape: f32[9,12,128], index: 1, kind: input, shape index: {}]
  %s2 = inlined_call_operand.vmem [shape: f32[1,128], index: 2, kind: input, shape index: {}]
  %s3 = inlined_call_operand.hbm [shape: f32[2,256,128], index: 3, kind: output, shape index: {}]
  %s4 = sld [smem:[#allocation0]]
  $region45: #{tpu_custom_call.1} parent=0
    _
  %s6 = ssub.s32 1, %s4
  %s7 = scalar_select 0, %s6, %s4
  $region1: #{tpu_custom_call.1} parent=0
    #allocation2 [shape = 'u8[131072]{0}', space=vmem, size = 0x20000, scoped, tag = 'output window, operand 0']
    #allocation3 [shape = 's32[2]{0}', space=sflag, size = 0x8, scoped, tag = 'scoped memory for tpu_custom_call.1']
    %8 = vsyncpa [#allocation3], 0
    %s9 = scalar_lea.sflag [#allocation3], 1
    %10 = vsyncpa %s9, 0
    loop: start=0, step=1, limit=6
    $region2: #{tpu_custom_call.1} parent=1 // loop_pre_header
      _
    $region3: #{tpu_custom_call.1} parent=1 // loop_header
      %s12 = sphi 0, %s16
      %p13 = scmp.ge.s32.totalorder %s12, 6
      %s19 = sphi 0, %s31
      %s20 = sphi 0, %s27
      %s21 = sphi 0, %s19
      %s22 = sphi 0, %s20
      %s23 = sphi 0, %s21
      %s24 = sphi 0, %s22
      %s34 = sphi 0, %s36
      %s37 = sphi 0, %s34
      %s38 = sphi 0, %s37
      %s54 = sphi 0, %s38
      %s58 = sphi 0, %s58
      %s60 = sphi 0, %s58
      %s61 = sphi 0, %s60
      %s75 = sphi 0, %s61
      %s79 = sphi 0, %s79
      %s81 = sphi 0, %s79
      %s82 = sphi 0, %s81
      %s96 = sphi 0, %s82
      %s104 = sphi 0, %s106
      %s107 = sphi 0, %s104
      %s108 = sphi 0, %s107
      %s124 = sphi 0, %s108
    $region4: #{tpu_custom_call.1} parent=1 // loop_header_branch
      %15 = sbr.rel (%p13) target = $region8
    $region5: #{tpu_custom_call.1} parent=1 // loop_body
      %s17 = ssub.s32 %s12, 1
      %s18 = ssub.s32 %s12, 2
      %s25 = sadd.s32 1, %s20
      %p26 = scmp.ge.s32.totalorder %s25, 2
      %s27 = scalar_select %p26, 0, %s25
      %s28 = sadd.s32 1, %s19
      %s29 = scalar_select %p26, %s28, %s19
      %p30 = scmp.ge.s32.totalorder %s29, 2
      %s31 = scalar_select %p30, 0, %s29
      %s32 = ssub.s32 %s19, %s31
      %p33 = scmp.eq.s32.totalorder %s32, 0
      %s35 = sadd.s32 %s34, 1
      %s36 = scalar_select %p33, %s34, %s35
      %p39 = pneg %p33
      %p40 = scmp.eq.s32.totalorder %s12, 3
      %p41 = por %p39, %p40
      %p42 = scmp.ne.s32.totalorder %s34, %s37
      %p43 = scmp.eq.s32.totalorder %s12, 0
      %p44 = por %p42, %p43
      %p45 = scmp.ne.s32.totalorder %s34, %s37
      %p46 = scmp.eq.s32.totalorder %s17, 3
      %p47 = por %p45, %p46
      %p48 = scmp.ne.s32.totalorder %s37, %s38
      %p49 = scmp.eq.s32.totalorder %s17, 0
      %p50 = por %p48, %p49
      %p51 = scmp.ne.s32.totalorder %s37, %s38
      %p52 = scmp.eq.s32.totalorder %s18, 3
      %p53 = por %p51, %p52
      %p55 = scmp.ne.s32.totalorder %s38, %s54
      %p56 = scmp.eq.s32.totalorder %s18, 0
      %p57 = por %p55, %p56
      %s59 = sadd.s32 %s58, 1
      %p62 = scmp.eq.s32.totalorder %s12, 3
      %p63 = scmp.ne.s32.totalorder %s58, %s60
      %p64 = scmp.eq.s32.totalorder %s12, 0
      %p65 = por %p63, %p64
      %p66 = scmp.ne.s32.totalorder %s58, %s60
      %p67 = scmp.eq.s32.totalorder %s17, 3
      %p68 = por %p66, %p67
      %p69 = scmp.ne.s32.totalorder %s60, %s61
      %p70 = scmp.eq.s32.totalorder %s17, 0
      %p71 = por %p69, %p70
      %p72 = scmp.ne.s32.totalorder %s60, %s61
      %p73 = scmp.eq.s32.totalorder %s18, 3
      %p74 = por %p72, %p73
      %p76 = scmp.ne.s32.totalorder %s61, %s75
      %p77 = scmp.eq.s32.totalorder %s18, 0
      %p78 = por %p76, %p77
      %s80 = sadd.s32 %s79, 1
      %p83 = scmp.eq.s32.totalorder %s12, 3
      %p84 = scmp.ne.s32.totalorder %s79, %s81
      %p85 = scmp.eq.s32.totalorder %s12, 0
      %p86 = por %p84, %p85
      %p87 = scmp.ne.s32.totalorder %s79, %s81
      %p88 = scmp.eq.s32.totalorder %s17, 3
      %p89 = por %p87, %p88
      %p90 = scmp.ne.s32.totalorder %s81, %s82
      %p91 = scmp.eq.s32.totalorder %s17, 0
      %p92 = por %p90, %p91
      %p93 = scmp.ne.s32.totalorder %s81, %s82
      %p94 = scmp.eq.s32.totalorder %s18, 3
      %p95 = por %p93, %p94
      %p97 = scmp.ne.s32.totalorder %s82, %s96
      %p98 = scmp.eq.s32.totalorder %s18, 0
      %p99 = por %p97, %p98
      %s100 = ssub.s32 %s19, %s31
      %s101 = ssub.s32 %s20, %s27
      %s102 = sor.u32 %s100, %s101
      %p103 = scmp.eq.s32.totalorder %s102, 0
      %s105 = sadd.s32 %s104, 1
      %s106 = scalar_select %p103, %s104, %s105
      %p109 = pneg %p103
      %p110 = scmp.eq.s32.totalorder %s12, 3
      %p111 = por %p109, %p110
      %p112 = scmp.ne.s32.totalorder %s104, %s107
      %p113 = scmp.eq.s32.totalorder %s12, 0
      %p114 = por %p112, %p113
      %p115 = scmp.ne.s32.totalorder %s104, %s107
      %p116 = scmp.eq.s32.totalorder %s17, 3
      %p117 = por %p115, %p116
      %p118 = scmp.ne.s32.totalorder %s107, %s108
      %p119 = scmp.eq.s32.totalorder %s17, 0
      %p120 = por %p118, %p119
      %p121 = scmp.ne.s32.totalorder %s107, %s108
      %p122 = scmp.eq.s32.totalorder %s18, 3
      %p123 = por %p121, %p122
      %p125 = scmp.ne.s32.totalorder %s108, %s124
      %p126 = scmp.eq.s32.totalorder %s18, 0
      %p127 = por %p125, %p126
      %p128 = scmp.le.s32.totalorder 1, %s12
      %p129 = scmp.lt.s32.totalorder %s12, 5
      %p130 = pnand %p128, %p129
      %p131 = pneg %p130
      // Predicated region
      $region9: #{tpu_custom_call.1} parent=5 // pred_check
        _
      $region10: #{tpu_custom_call.1} parent=5 // pred_check_branch
        %133 = sbr.rel (%p130) target = $region12
      $region11: #{tpu_custom_call.1} parent=5 // pred_region
        %s134 = ssub.s32 %s12, 1
        // Predicated region
        $region13: #{tpu_custom_call.1} parent=11 // pred_check
          %p135 = pneg %p71
        $region14: #{tpu_custom_call.1} parent=11 // pred_check_branch
          %137 = sbr.rel (%p135) target = $region16
        $region15: #{tpu_custom_call.1} parent=11 // pred_region
          _
        $region16: #{tpu_custom_call.1} parent=11 // pred_fallthru
          _
        // Predicated region
        $region17: #{tpu_custom_call.1} parent=11 // pred_check
          %p138 = pneg %p92
        $region18: #{tpu_custom_call.1} parent=11 // pred_check_branch
          %140 = sbr.rel (%p138) target = $region20
        $region19: #{tpu_custom_call.1} parent=11 // pred_region
          _
        $region20: #{tpu_custom_call.1} parent=11 // pred_fallthru
          _
      $region12: #{tpu_custom_call.1} parent=5 // pred_fallthru
        _
      %p141 = scmp.lt.s32.totalorder %s12, 4
      // Predicated region
      $region21: #{tpu_custom_call.1} parent=5 // pred_check
        %p142 = pneg %p141
      $region22: #{tpu_custom_call.1} parent=5 // pred_check_branch
        %144 = sbr.rel (%p142) target = $region24
      $region23: #{tpu_custom_call.1} parent=5 // pred_region
        // Predicated region
        $region25: #{tpu_custom_call.1} parent=23 // pred_check
          %p145 = pneg %p44
        $region26: #{tpu_custom_call.1} parent=23 // pred_check_branch
          %147 = sbr.rel (%p145) target = $region28
        $region27: #{tpu_custom_call.1} parent=23 // pred_region
          %p148 = scmp.lt.s32.totalorder %s19, 1
          %s149 = scalar_select %p148, %s19, 1
          %s150 = smul.addr %s149, 144
          %s151 = smul.addr %s150, 8
          %s152 = scalar_lea.vmem %s0, %s151
        $region28: #{tpu_custom_call.1} parent=23 // pred_fallthru
          _
      $region24: #{tpu_custom_call.1} parent=5 // pred_fallthru
        _
      %p153 = scmp.le.s32.totalorder 1, %s12
      %p154 = scmp.lt.s32.totalorder %s12, 5
      %p155 = pnand %p153, %p154
      %p156 = pneg %p155
      // Predicated region
      $region29: #{tpu_custom_call.1} parent=5 // pred_check
        _
      $region30: #{tpu_custom_call.1} parent=5 // pred_check_branch
        %158 = sbr.rel (%p155) target = $region32
      $region31: #{tpu_custom_call.1} parent=5 // pred_region
        %s159 = ssub.s32 %s12, 1
        %p160 = scmp.lt.s32.totalorder %s21, 1
        %s161 = scalar_select %p160, %s21, 1
        %s162 = smul.addr %s161, 144
        %s163 = smul.addr %s162, 8
        %s164 = scalar_lea.vmem %s0, %s163
        %p165 = pneg %p50
        %p166 = pneg %p47
        %p167 = pneg %p71
        %p168 = pneg %p68
        %p169 = pneg %p92
        %p170 = pneg %p89
        %p171 = pneg %p120
        %p172 = pneg %p117
        %s173 = sand.u32 %s107, 1
        %s174 = scalar_lea.sflag [#allocation3], %s173
        %s175 = sand.u32 %s107, 1
        %s176 = smul.addr %s175, 128
        %s177 = scalar_lea.vmem [#allocation2], %s176
        %p178 = scmp.lt.s32.totalorder %s21, 1
        %s179 = scalar_select %p178, %s21, 1
        %s180 = smul.addr %s179, 144
        %s181 = smul.addr %s180, 8
        %s182 = scalar_lea.vmem %s0, %s181
        %s183 = smul.u32 16, %s22
        %s184 = smul.u32 %s22, 128
        %s185 = sadd.s32 %s184, 48
        %s186 = scalar_lea.vmem %s182, %s185
        %v187 = vld [vmem:[%s186] sm:$0xff]
        %v188 = vld [vmem:[%s186 + $0x8] sm:$0xff]
        %v189 = vld [vmem:[%s186 + $0x10] sm:$0xff]
        %v190 = vld [vmem:[%s186 + $0x18] sm:$0xff]
        %v191 = vld [vmem:[%s186 + $0x20] sm:$0xff]
        %v192 = vld [vmem:[%s186 + $0x28] sm:$0xff]
        %v193 = vld [vmem:[%s186 + $0x30] sm:$0xff]
        %v194 = vld [vmem:[%s186 + $0x38] sm:$0xff]
        %v195 = vld [vmem:[%s186 + $0x40] sm:$0xff]
        %v196 = vld [vmem:[%s186 + $0x48] sm:$0xff]
        %v197 = vld [vmem:[%s186 + $0x50] sm:$0xff]
        %v198 = vld [vmem:[%s186 + $0x58] sm:$0xff]
        %v199 = vld [vmem:[%s186 + $0x60] sm:$0xff]
        %v200 = vld [vmem:[%s186 + $0x68] sm:$0xff]
        %v201 = vld [vmem:[%s186 + $0x70] sm:$0xff]
        %v202 = vld [vmem:[%s186 + $0x78] sm:$0xff]
        %v203 = vld [vmem:[%s1] sm:$0xff]
        %v204 = vld [vmem:[%s1 + $0x8] sm:$0xf]
        %s205 = sadd.s32 %s184, 64
        %s206 = scalar_lea.vmem %s182, %s205
        %v207 = vld [vmem:[%s206] sm:$0xff]
        %v208 = vld [vmem:[%s206 + $0x8] sm:$0xff]
        %v209 = vld [vmem:[%s206 + $0x10] sm:$0xff]
        %v210 = vld [vmem:[%s206 + $0x18] sm:$0xff]
        %v211 = vld [vmem:[%s206 + $0x20] sm:$0xff]
        %v212 = vld [vmem:[%s206 + $0x28] sm:$0xff]
        %v213 = vld [vmem:[%s206 + $0x30] sm:$0xff]
        %v214 = vld [vmem:[%s206 + $0x38] sm:$0xff]
        %v215 = vld [vmem:[%s206 + $0x40] sm:$0xff]
        %v216 = vld [vmem:[%s206 + $0x48] sm:$0xff]
        %v217 = vld [vmem:[%s206 + $0x50] sm:$0xff]
        %v218 = vld [vmem:[%s206 + $0x58] sm:$0xff]
        %v219 = vld [vmem:[%s206 + $0x60] sm:$0xff]
        %v220 = vld [vmem:[%s206 + $0x68] sm:$0xff]
        %v221 = vld [vmem:[%s206 + $0x70] sm:$0xff]
        %v222 = vld [vmem:[%s206 + $0x78] sm:$0xff]
        %s223 = scalar_lea.vmem %s1, 16
        %v224 = vld [vmem:[%s223] sm:$0xff]
        %v225 = vld [vmem:[%s223 + $0x8] sm:$0xf]
        %vm226 = vcmask 97280
        %v228 = vsel %vm226, %v207, 0
        %v231 = vsel %vm226, %v208, 0
        %v234 = vsel %vm226, %v209, 0
        %v237 = vsel %vm226, %v210, 0
        %v240 = vsel %vm226, %v211, 0
        %v243 = vsel %vm226, %v212, 0
        %v246 = vsel %vm226, %v213, 0
        %v249 = vsel %vm226, %v214, 0
        %v252 = vsel %vm226, %v215, 0
        %v255 = vsel %vm226, %v216, 0
        %v258 = vsel %vm226, %v217, 0
        %v261 = vsel %vm226, %v218, 0
        %v264 = vsel %vm226, %v219, 0
        %v267 = vsel %vm226, %v220, 0
        %v270 = vsel %vm226, %v221, 0
        %v273 = vsel %vm226, %v222, 0
        %vm275 = vcmask 1043456
        %v277 = vsel %vm275, %v225, 0
        %279 = vmatpush.msra.mxu0 0.0
        %280 = vmatpush.msra.mxu0 0.0
        %281 = vmatpush.msra.mxu0 0.0
        %282 = vmatpush.msra.mxu0 0.0
        %283 = vmatpush.msra.mxu0 0.0
        %284 = vmatpush.msra.mxu0 0.0
        %285 = vmatpush.msra.mxu0 0.0
        %286 = vmatpush.msra.mxu0 0.0
        %287 = vmatpush.msra.mxu0 0.0
        %288 = vmatpush.msra.mxu0 0.0
        %289 = vmatpush.msra.mxu0 0.0
        %290 = vmatpush.msra.mxu0 0.0
        %291 = vmatpush.msra.mxu0 0.0
        %292 = vmatpush.msra.mxu0 0.0
        %293 = vmatpush.msra.mxu0 %v277
        %294 = vmatpush.msra.mxu0 %v224
        %295 = vmatmul.f32.gmra.mxu0 %v228
        %v296 = vpop.f32.mrf.mxu0
        %v297 = vadd.f32 0.0, %v296
        %298 = vmatmul.f32.gmra.mxu0 %v231
        %v299 = vpop.f32.mrf.mxu0
        %v300 = vadd.f32 0.0, %v299
        %301 = vmatmul.f32.gmra.mxu0 %v234
        %v302 = vpop.f32.mrf.mxu0
        %v303 = vadd.f32 0.0, %v302
        %304 = vmatmul.f32.gmra.mxu0 %v237
        %v305 = vpop.f32.mrf.mxu0
        %v306 = vadd.f32 0.0, %v305
        %307 = vmatmul.f32.gmra.mxu0 %v240
        %v308 = vpop.f32.mrf.mxu0
        %v309 = vadd.f32 0.0, %v308
        %310 = vmatmul.f32.gmra.mxu0 %v243
        %v311 = vpop.f32.mrf.mxu0
        %v312 = vadd.f32 0.0, %v311
        %313 = vmatmul.f32.gmra.mxu0 %v246
        %v314 = vpop.f32.mrf.mxu0
        %v315 = vadd.f32 0.0, %v314
        %316 = vmatmul.f32.gmra.mxu0 %v249
        %v317 = vpop.f32.mrf.mxu0
        %v318 = vadd.f32 0.0, %v317
        %319 = vmatmul.f32.gmra.mxu0 %v252
        %v320 = vpop.f32.mrf.mxu0
        %v321 = vadd.f32 0.0, %v320
        %322 = vmatmul.f32.gmra.mxu0 %v255
        %v323 = vpop.f32.mrf.mxu0
        %v324 = vadd.f32 0.0, %v323
        %325 = vmatmul.f32.gmra.mxu0 %v258
        %v326 = vpop.f32.mrf.mxu0
        %v327 = vadd.f32 0.0, %v326
        %328 = vmatmul.f32.gmra.mxu0 %v261
        %v329 = vpop.f32.mrf.mxu0
        %v330 = vadd.f32 0.0, %v329
        %331 = vmatmul.f32.gmra.mxu0 %v264
        %v332 = vpop.f32.mrf.mxu0
        %v333 = vadd.f32 0.0, %v332
        %334 = vmatmul.f32.gmra.mxu0 %v267
        %v335 = vpop.f32.mrf.mxu0
        %v336 = vadd.f32 0.0, %v335
        %337 = vmatmul.f32.gmra.mxu0 %v270
        %v338 = vpop.f32.mrf.mxu0
        %v339 = vadd.f32 0.0, %v338
        %340 = vmatmul.f32.gmra.mxu0 %v273
        %v341 = vpop.f32.mrf.mxu0
        %v342 = vadd.f32 0.0, %v341
        %343 = vdwg.mxu0
        %v345 = vsel %vm226, %v187, 0
        %v348 = vsel %vm226, %v188, 0
        %v351 = vsel %vm226, %v189, 0
        %v354 = vsel %vm226, %v190, 0
        %v357 = vsel %vm226, %v191, 0
        %v360 = vsel %vm226, %v192, 0
        %v363 = vsel %vm226, %v193, 0
        %v366 = vsel %vm226, %v194, 0
        %v369 = vsel %vm226, %v195, 0
        %v372 = vsel %vm226, %v196, 0
        %v375 = vsel %vm226, %v197, 0
        %v378 = vsel %vm226, %v198, 0
        %v381 = vsel %vm226, %v199, 0
        %v384 = vsel %vm226, %v200, 0
        %v387 = vsel %vm226, %v201, 0
        %v390 = vsel %vm226, %v202, 0
        %v393 = vsel %vm275, %v204, 0
        %395 = vmatpush.msra.mxu0 0.0
        %396 = vmatpush.msra.mxu0 0.0
        %397 = vmatpush.msra.mxu0 0.0
        %398 = vmatpush.msra.mxu0 0.0
        %399 = vmatpush.msra.mxu0 0.0
        %400 = vmatpush.msra.mxu0 0.0
        %401 = vmatpush.msra.mxu0 0.0
        %402 = vmatpush.msra.mxu0 0.0
        %403 = vmatpush.msra.mxu0 0.0
        %404 = vmatpush.msra.mxu0 0.0
        %405 = vmatpush.msra.mxu0 0.0
        %406 = vmatpush.msra.mxu0 0.0
        %407 = vmatpush.msra.mxu0 0.0
        %408 = vmatpush.msra.mxu0 0.0
        %409 = vmatpush.msra.mxu0 %v393
        %410 = vmatpush.msra.mxu0 %v203
        %411 = vmatmul.f32.gmra.mxu0 %v345
        %v412 = vpop.f32.mrf.mxu0
        %v413 = vadd.f32 %v297, %v412
        %414 = vmatmul.f32.gmra.mxu0 %v348
        %v415 = vpop.f32.mrf.mxu0
        %v416 = vadd.f32 %v300, %v415
        %417 = vmatmul.f32.gmra.mxu0 %v351
        %v418 = vpop.f32.mrf.mxu0
        %v419 = vadd.f32 %v303, %v418
        %420 = vmatmul.f32.gmra.mxu0 %v354
        %v421 = vpop.f32.mrf.mxu0
        %v422 = vadd.f32 %v306, %v421
        %423 = vmatmul.f32.gmra.mxu0 %v357
        %v424 = vpop.f32.mrf.mxu0
        %v425 = vadd.f32 %v309, %v424
        %426 = vmatmul.f32.gmra.mxu0 %v360
        %v427 = vpop.f32.mrf.mxu0
        %v428 = vadd.f32 %v312, %v427
        %429 = vmatmul.f32.gmra.mxu0 %v363
        %v430 = vpop.f32.mrf.mxu0
        %v431 = vadd.f32 %v315, %v430
        %432 = vmatmul.f32.gmra.mxu0 %v366
        %v433 = vpop.f32.mrf.mxu0
        %v434 = vadd.f32 %v318, %v433
        %435 = vmatmul.f32.gmra.mxu0 %v369
        %v436 = vpop.f32.mrf.mxu0
        %v437 = vadd.f32 %v321, %v436
        %438 = vmatmul.f32.gmra.mxu0 %v372
        %v439 = vpop.f32.mrf.mxu0
        %v440 = vadd.f32 %v324, %v439
        %441 = vmatmul.f32.gmra.mxu0 %v375
        %v442 = vpop.f32.mrf.mxu0
        %v443 = vadd.f32 %v327, %v442
        %444 = vmatmul.f32.gmra.mxu0 %v378
        %v445 = vpop.f32.mrf.mxu0
        %v446 = vadd.f32 %v330, %v445
        %447 = vmatmul.f32.gmra.mxu0 %v381
        %v448 = vpop.f32.mrf.mxu0
        %v449 = vadd.f32 %v333, %v448
        %450 = vmatmul.f32.gmra.mxu0 %v384
        %v451 = vpop.f32.mrf.mxu0
        %v452 = vadd.f32 %v336, %v451
        %453 = vmatmul.f32.gmra.mxu0 %v387
        %v454 = vpop.f32.mrf.mxu0
        %v455 = vadd.f32 %v339, %v454
        %456 = vmatmul.f32.gmra.mxu0 %v390
        %v457 = vpop.f32.mrf.mxu0
        %v458 = vadd.f32 %v342, %v457
        %459 = vdwg.mxu0
        %s460 = sadd.s32 %s184, 80
        %s461 = scalar_lea.vmem %s182, %s460
        %v462 = vld [vmem:[%s461] sm:$0xff]
        %v463 = vld [vmem:[%s461 + $0x8] sm:$0xff]
        %v464 = vld [vmem:[%s461 + $0x10] sm:$0xff]
        %v465 = vld [vmem:[%s461 + $0x18] sm:$0xff]
        %v466 = vld [vmem:[%s461 + $0x20] sm:$0xff]
        %v467 = vld [vmem:[%s461 + $0x28] sm:$0xff]
        %v468 = vld [vmem:[%s461 + $0x30] sm:$0xff]
        %v469 = vld [vmem:[%s461 + $0x38] sm:$0xff]
        %v470 = vld [vmem:[%s461 + $0x40] sm:$0xff]
        %v471 = vld [vmem:[%s461 + $0x48] sm:$0xff]
        %v472 = vld [vmem:[%s461 + $0x50] sm:$0xff]
        %v473 = vld [vmem:[%s461 + $0x58] sm:$0xff]
        %v474 = vld [vmem:[%s461 + $0x60] sm:$0xff]
        %v475 = vld [vmem:[%s461 + $0x68] sm:$0xff]
        %v476 = vld [vmem:[%s461 + $0x70] sm:$0xff]
        %v477 = vld [vmem:[%s461 + $0x78] sm:$0xff]
        %s478 = scalar_lea.vmem %s1, 32
        %v479 = vld [vmem:[%s478] sm:$0xff]
        %v480 = vld [vmem:[%s478 + $0x8] sm:$0xf]
        %v482 = vsel %vm226, %v462, 0
        %v485 = vsel %vm226, %v463, 0
        %v488 = vsel %vm226, %v464, 0
        %v491 = vsel %vm226, %v465, 0
        %v494 = vsel %vm226, %v466, 0
        %v497 = vsel %vm226, %v467, 0
        %v500 = vsel %vm226, %v468, 0
        %v503 = vsel %vm226, %v469, 0
        %v506 = vsel %vm226, %v470, 0
        %v509 = vsel %vm226, %v471, 0
        %v512 = vsel %vm226, %v472, 0
        %v515 = vsel %vm226, %v473, 0
        %v518 = vsel %vm226, %v474, 0
        %v521 = vsel %vm226, %v475, 0
        %v524 = vsel %vm226, %v476, 0
        %v527 = vsel %vm226, %v477, 0
        %v530 = vsel %vm275, %v480, 0
        %532 = vmatpush.msra.mxu0 0.0
        %533 = vmatpush.msra.mxu0 0.0
        %534 = vmatpush.msra.mxu0 0.0
        %535 = vmatpush.msra.mxu0 0.0
        %536 = vmatpush.msra.mxu0 0.0
        %537 = vmatpush.msra.mxu0 0.0
        %538 = vmatpush.msra.mxu0 0.0
        %539 = vmatpush.msra.mxu0 0.0
        %540 = vmatpush.msra.mxu0 0.0
        %541 = vmatpush.msra.mxu0 0.0
        %542 = vmatpush.msra.mxu0 0.0
        %543 = vmatpush.msra.mxu0 0.0
        %544 = vmatpush.msra.mxu0 0.0
        %545 = vmatpush.msra.mxu0 0.0
        %546 = vmatpush.msra.mxu0 %v530
        %547 = vmatpush.msra.mxu0 %v479
        %548 = vmatmul.f32.gmra.mxu0 %v482
        %v549 = vpop.f32.mrf.mxu0
        %v550 = vadd.f32 0.0, %v549
        %551 = vmatmul.f32.gmra.mxu0 %v485
        %v552 = vpop.f32.mrf.mxu0
        %v553 = vadd.f32 0.0, %v552
        %554 = vmatmul.f32.gmra.mxu0 %v488
        %v555 = vpop.f32.mrf.mxu0
        %v556 = vadd.f32 0.0, %v555
        %557 = vmatmul.f32.gmra.mxu0 %v491
        %v558 = vpop.f32.mrf.mxu0
        %v559 = vadd.f32 0.0, %v558
        %560 = vmatmul.f32.gmra.mxu0 %v494
        %v561 = vpop.f32.mrf.mxu0
        %v562 = vadd.f32 0.0, %v561
        %563 = vmatmul.f32.gmra.mxu0 %v497
        %v564 = vpop.f32.mrf.mxu0
        %v565 = vadd.f32 0.0, %v564
        %566 = vmatmul.f32.gmra.mxu0 %v500
        %v567 = vpop.f32.mrf.mxu0
        %v568 = vadd.f32 0.0, %v567
        %569 = vmatmul.f32.gmra.mxu0 %v503
        %v570 = vpop.f32.mrf.mxu0
        %v571 = vadd.f32 0.0, %v570
        %572 = vmatmul.f32.gmra.mxu0 %v506
        %v573 = vpop.f32.mrf.mxu0
        %v574 = vadd.f32 0.0, %v573
        %575 = vmatmul.f32.gmra.mxu0 %v509
        %v576 = vpop.f32.mrf.mxu0
        %v577 = vadd.f32 0.0, %v576
        %578 = vmatmul.f32.gmra.mxu0 %v512
        %v579 = vpop.f32.mrf.mxu0
        %v580 = vadd.f32 0.0, %v579
        %581 = vmatmul.f32.gmra.mxu0 %v515
        %v582 = vpop.f32.mrf.mxu0
        %v583 = vadd.f32 0.0, %v582
        %584 = vmatmul.f32.gmra.mxu0 %v518
        %v585 = vpop.f32.mrf.mxu0
        %v586 = vadd.f32 0.0, %v585
        %587 = vmatmul.f32.gmra.mxu0 %v521
        %v588 = vpop.f32.mrf.mxu0
        %v589 = vadd.f32 0.0, %v588
        %590 = vmatmul.f32.gmra.mxu0 %v524
        %v591 = vpop.f32.mrf.mxu0
        %v592 = vadd.f32 0.0, %v591
        %593 = vmatmul.f32.gmra.mxu0 %v527
        %v594 = vpop.f32.mrf.mxu0
        %v595 = vadd.f32 0.0, %v594
        %596 = vdwg.mxu0
        %v597 = vadd.f32 %v413, %v550
        %v598 = vadd.f32 %v416, %v553
        %v599 = vadd.f32 %v419, %v556
        %v600 = vadd.f32 %v422, %v559
        %v601 = vadd.f32 %v425, %v562
        %v602 = vadd.f32 %v428, %v565
        %v603 = vadd.f32 %v431, %v568
        %v604 = vadd.f32 %v434, %v571
        %v605 = vadd.f32 %v437, %v574
        %v606 = vadd.f32 %v440, %v577
        %v607 = vadd.f32 %v443, %v580
        %v608 = vadd.f32 %v446, %v583
        %v609 = vadd.f32 %v449, %v586
        %v610 = vadd.f32 %v452, %v589
        %v611 = vadd.f32 %v455, %v592
        %v612 = vadd.f32 %v458, %v595
        %s613 = sadd.s32 %s184, 32
        %s614 = sadd.s32 %s613, 384
        %s615 = scalar_lea.vmem %s182, %s614
        %v616 = vld [vmem:[%s615] sm:$0xff]
        %v617 = vld [vmem:[%s615 + $0x8] sm:$0xff]
        %v618 = vld [vmem:[%s615 + $0x10] sm:$0xff]
        %v619 = vld [vmem:[%s615 + $0x18] sm:$0xff]
        %v620 = vld [vmem:[%s615 + $0x20] sm:$0xff]
        %v621 = vld [vmem:[%s615 + $0x28] sm:$0xff]
        %v622 = vld [vmem:[%s615 + $0x30] sm:$0xff]
        %v623 = vld [vmem:[%s615 + $0x38] sm:$0xff]
        %v624 = vld [vmem:[%s615 + $0x40] sm:$0xff]
        %v625 = vld [vmem:[%s615 + $0x48] sm:$0xff]
        %v626 = vld [vmem:[%s615 + $0x50] sm:$0xff]
        %v627 = vld [vmem:[%s615 + $0x58] sm:$0xff]
        %v628 = vld [vmem:[%s615 + $0x60] sm:$0xff]
        %v629 = vld [vmem:[%s615 + $0x68] sm:$0xff]
        %v630 = vld [vmem:[%s615 + $0x70] sm:$0xff]
        %v631 = vld [vmem:[%s615 + $0x78] sm:$0xff]
        %s632 = scalar_lea.vmem %s1, 48
        %v633 = vld [vmem:[%s632] sm:$0xff]
        %v634 = vld [vmem:[%s632 + $0x8] sm:$0xf]
        %v636 = vsel %vm226, %v616, 0
        %v639 = vsel %vm226, %v617, 0
        %v642 = vsel %vm226, %v618, 0
        %v645 = vsel %vm226, %v619, 0
        %v648 = vsel %vm226, %v620, 0
        %v651 = vsel %vm226, %v621, 0
        %v654 = vsel %vm226, %v622, 0
        %v657 = vsel %vm226, %v623, 0
        %v660 = vsel %vm226, %v624, 0
        %v663 = vsel %vm226, %v625, 0
        %v666 = vsel %vm226, %v626, 0
        %v669 = vsel %vm226, %v627, 0
        %v672 = vsel %vm226, %v628, 0
        %v675 = vsel %vm226, %v629, 0
        %v678 = vsel %vm226, %v630, 0
        %v681 = vsel %vm226, %v631, 0
        %v684 = vsel %vm275, %v634, 0
        %686 = vmatpush.msra.mxu0 0.0
        %687 = vmatpush.msra.mxu0 0.0
        %688 = vmatpush.msra.mxu0 0.0
        %689 = vmatpush.msra.mxu0 0.0
        %690 = vmatpush.msra.mxu0 0.0
        %691 = vmatpush.msra.mxu0 0.0
        %692 = vmatpush.msra.mxu0 0.0
        %693 = vmatpush.msra.mxu0 0.0
        %694 = vmatpush.msra.mxu0 0.0
        %695 = vmatpush.msra.mxu0 0.0
        %696 = vmatpush.msra.mxu0 0.0
        %697 = vmatpush.msra.mxu0 0.0
        %698 = vmatpush.msra.mxu0 0.0
        %699 = vmatpush.msra.mxu0 0.0
        %700 = vmatpush.msra.mxu0 %v684
        %701 = vmatpush.msra.mxu0 %v633
        %702 = vmatmul.f32.gmra.mxu0 %v636
        %v703 = vpop.f32.mrf.mxu0
        %v704 = vadd.f32 0.0, %v703
        %705 = vmatmul.f32.gmra.mxu0 %v639
        %v706 = vpop.f32.mrf.mxu0
        %v707 = vadd.f32 0.0, %v706
        %708 = vmatmul.f32.gmra.mxu0 %v642
        %v709 = vpop.f32.mrf.mxu0
        %v710 = vadd.f32 0.0, %v709
        %711 = vmatmul.f32.gmra.mxu0 %v645
        %v712 = vpop.f32.mrf.mxu0
        %v713 = vadd.f32 0.0, %v712
        %714 = vmatmul.f32.gmra.mxu0 %v648
        %v715 = vpop.f32.mrf.mxu0
        %v716 = vadd.f32 0.0, %v715
        %717 = vmatmul.f32.gmra.mxu0 %v651
        %v718 = vpop.f32.mrf.mxu0
        %v719 = vadd.f32 0.0, %v718
        %720 = vmatmul.f32.gmra.mxu0 %v654
        %v721 = vpop.f32.mrf.mxu0
        %v722 = vadd.f32 0.0, %v721
        %723 = vmatmul.f32.gmra.mxu0 %v657
        %v724 = vpop.f32.mrf.mxu0
        %v725 = vadd.f32 0.0, %v724
        %726 = vmatmul.f32.gmra.mxu0 %v660
        %v727 = vpop.f32.mrf.mxu0
        %v728 = vadd.f32 0.0, %v727
        %729 = vmatmul.f32.gmra.mxu0 %v663
        %v730 = vpop.f32.mrf.mxu0
        %v731 = vadd.f32 0.0, %v730
        %732 = vmatmul.f32.gmra.mxu0 %v666
        %v733 = vpop.f32.mrf.mxu0
        %v734 = vadd.f32 0.0, %v733
        %735 = vmatmul.f32.gmra.mxu0 %v669
        %v736 = vpop.f32.mrf.mxu0
        %v737 = vadd.f32 0.0, %v736
        %738 = vmatmul.f32.gmra.mxu0 %v672
        %v739 = vpop.f32.mrf.mxu0
        %v740 = vadd.f32 0.0, %v739
        %741 = vmatmul.f32.gmra.mxu0 %v675
        %v742 = vpop.f32.mrf.mxu0
        %v743 = vadd.f32 0.0, %v742
        %744 = vmatmul.f32.gmra.mxu0 %v678
        %v745 = vpop.f32.mrf.mxu0
        %v746 = vadd.f32 0.0, %v745
        %747 = vmatmul.f32.gmra.mxu0 %v681
        %v748 = vpop.f32.mrf.mxu0
        %v749 = vadd.f32 0.0, %v748
        %750 = vdwg.mxu0
        %v751 = vadd.f32 %v597, %v704
        %v752 = vadd.f32 %v598, %v707
        %v753 = vadd.f32 %v599, %v710
        %v754 = vadd.f32 %v600, %v713
        %v755 = vadd.f32 %v601, %v716
        %v756 = vadd.f32 %v602, %v719
        %v757 = vadd.f32 %v603, %v722
        %v758 = vadd.f32 %v604, %v725
        %v759 = vadd.f32 %v605, %v728
        %v760 = vadd.f32 %v606, %v731
        %v761 = vadd.f32 %v607, %v734
        %v762 = vadd.f32 %v608, %v737
        %v763 = vadd.f32 %v609, %v740
        %v764 = vadd.f32 %v610, %v743
        %v765 = vadd.f32 %v611, %v746
        %v766 = vadd.f32 %v612, %v749
        %s767 = sadd.s32 %s205, 384
        %s768 = scalar_lea.vmem %s182, %s767
        %v769 = vld [vmem:[%s768] sm:$0xff]
        %v770 = vld [vmem:[%s768 + $0x8] sm:$0xff]
        %v771 = vld [vmem:[%s768 + $0x10] sm:$0xff]
        %v772 = vld [vmem:[%s768 + $0x18] sm:$0xff]
        %v773 = vld [vmem:[%s768 + $0x20] sm:$0xff]
        %v774 = vld [vmem:[%s768 + $0x28] sm:$0xff]
        %v775 = vld [vmem:[%s768 + $0x30] sm:$0xff]
        %v776 = vld [vmem:[%s768 + $0x38] sm:$0xff]
        %v777 = vld [vmem:[%s768 + $0x40] sm:$0xff]
        %v778 = vld [vmem:[%s768 + $0x48] sm:$0xff]
        %v779 = vld [vmem:[%s768 + $0x50] sm:$0xff]
        %v780 = vld [vmem:[%s768 + $0x58] sm:$0xff]
        %v781 = vld [vmem:[%s768 + $0x60] sm:$0xff]
        %v782 = vld [vmem:[%s768 + $0x68] sm:$0xff]
        %v783 = vld [vmem:[%s768 + $0x70] sm:$0xff]
        %v784 = vld [vmem:[%s768 + $0x78] sm:$0xff]
        %s785 = scalar_lea.vmem %s1, 64
        %v786 = vld [vmem:[%s785] sm:$0xff]
        %v787 = vld [vmem:[%s785 + $0x8] sm:$0xf]
        %v789 = vsel %vm226, %v769, 0
        %v792 = vsel %vm226, %v770, 0
        %v795 = vsel %vm226, %v771, 0
        %v798 = vsel %vm226, %v772, 0
        %v801 = vsel %vm226, %v773, 0
        %v804 = vsel %vm226, %v774, 0
        %v807 = vsel %vm226, %v775, 0
        %v810 = vsel %vm226, %v776, 0
        %v813 = vsel %vm226, %v777, 0
        %v816 = vsel %vm226, %v778, 0
        %v819 = vsel %vm226, %v779, 0
        %v822 = vsel %vm226, %v780, 0
        %v825 = vsel %vm226, %v781, 0
        %v828 = vsel %vm226, %v782, 0
        %v831 = vsel %vm226, %v783, 0
        %v834 = vsel %vm226, %v784, 0
        %v837 = vsel %vm275, %v787, 0
        %839 = vmatpush.msra.mxu0 0.0
        %840 = vmatpush.msra.mxu0 0.0
        %841 = vmatpush.msra.mxu0 0.0
        %842 = vmatpush.msra.mxu0 0.0
        %843 = vmatpush.msra.mxu0 0.0
        %844 = vmatpush.msra.mxu0 0.0
        %845 = vmatpush.msra.mxu0 0.0
        %846 = vmatpush.msra.mxu0 0.0
        %847 = vmatpush.msra.mxu0 0.0
        %848 = vmatpush.msra.mxu0 0.0
        %849 = vmatpush.msra.mxu0 0.0
        %850 = vmatpush.msra.mxu0 0.0
        %851 = vmatpush.msra.mxu0 0.0
        %852 = vmatpush.msra.mxu0 0.0
        %853 = vmatpush.msra.mxu0 %v837
        %854 = vmatpush.msra.mxu0 %v786
        %855 = vmatmul.f32.gmra.mxu0 %v789
        %v856 = vpop.f32.mrf.mxu0
        %v857 = vadd.f32 0.0, %v856
        %858 = vmatmul.f32.gmra.mxu0 %v792
        %v859 = vpop.f32.mrf.mxu0
        %v860 = vadd.f32 0.0, %v859
        %861 = vmatmul.f32.gmra.mxu0 %v795
        %v862 = vpop.f32.mrf.mxu0
        %v863 = vadd.f32 0.0, %v862
        %864 = vmatmul.f32.gmra.mxu0 %v798
        %v865 = vpop.f32.mrf.mxu0
        %v866 = vadd.f32 0.0, %v865
        %867 = vmatmul.f32.gmra.mxu0 %v801
        %v868 = vpop.f32.mrf.mxu0
        %v869 = vadd.f32 0.0, %v868
        %870 = vmatmul.f32.gmra.mxu0 %v804
        %v871 = vpop.f32.mrf.mxu0
        %v872 = vadd.f32 0.0, %v871
        %873 = vmatmul.f32.gmra.mxu0 %v807
        %v874 = vpop.f32.mrf.mxu0
        %v875 = vadd.f32 0.0, %v874
        %876 = vmatmul.f32.gmra.mxu0 %v810
        %v877 = vpop.f32.mrf.mxu0
        %v878 = vadd.f32 0.0, %v877
        %879 = vmatmul.f32.gmra.mxu0 %v813
        %v880 = vpop.f32.mrf.mxu0
        %v881 = vadd.f32 0.0, %v880
        %882 = vmatmul.f32.gmra.mxu0 %v816
        %v883 = vpop.f32.mrf.mxu0
        %v884 = vadd.f32 0.0, %v883
        %885 = vmatmul.f32.gmra.mxu0 %v819
        %v886 = vpop.f32.mrf.mxu0
        %v887 = vadd.f32 0.0, %v886
        %888 = vmatmul.f32.gmra.mxu0 %v822
        %v889 = vpop.f32.mrf.mxu0
        %v890 = vadd.f32 0.0, %v889
        %891 = vmatmul.f32.gmra.mxu0 %v825
        %v892 = vpop.f32.mrf.mxu0
        %v893 = vadd.f32 0.0, %v892
        %894 = vmatmul.f32.gmra.mxu0 %v828
        %v895 = vpop.f32.mrf.mxu0
        %v896 = vadd.f32 0.0, %v895
        %897 = vmatmul.f32.gmra.mxu0 %v831
        %v898 = vpop.f32.mrf.mxu0
        %v899 = vadd.f32 0.0, %v898
        %900 = vmatmul.f32.gmra.mxu0 %v834
        %v901 = vpop.f32.mrf.mxu0
        %v902 = vadd.f32 0.0, %v901
        %903 = vdwg.mxu0
        %v904 = vadd.f32 %v751, %v857
        %v905 = vadd.f32 %v752, %v860
        %v906 = vadd.f32 %v753, %v863
        %v907 = vadd.f32 %v754, %v866
        %v908 = vadd.f32 %v755, %v869
        %v909 = vadd.f32 %v756, %v872
        %v910 = vadd.f32 %v757, %v875
        %v911 = vadd.f32 %v758, %v878
        %v912 = vadd.f32 %v759, %v881
        %v913 = vadd.f32 %v760, %v884
        %v914 = vadd.f32 %v761, %v887
        %v915 = vadd.f32 %v762, %v890
        %v916 = vadd.f32 %v763, %v893
        %v917 = vadd.f32 %v764, %v896
        %v918 = vadd.f32 %v765, %v899
        %v919 = vadd.f32 %v766, %v902
        %s920 = sadd.s32 %s184, 96
        %s921 = sadd.s32 %s920, 384
        %s922 = scalar_lea.vmem %s182, %s921
        %v923 = vld [vmem:[%s922] sm:$0xff]
        %v924 = vld [vmem:[%s922 + $0x8] sm:$0xff]
        %v925 = vld [vmem:[%s922 + $0x10] sm:$0xff]
        %v926 = vld [vmem:[%s922 + $0x18] sm:$0xff]
        %v927 = vld [vmem:[%s922 + $0x20] sm:$0xff]
        %v928 = vld [vmem:[%s922 + $0x28] sm:$0xff]
        %v929 = vld [vmem:[%s922 + $0x30] sm:$0xff]
        %v930 = vld [vmem:[%s922 + $0x38] sm:$0xff]
        %v931 = vld [vmem:[%s922 + $0x40] sm:$0xff]
        %v932 = vld [vmem:[%s922 + $0x48] sm:$0xff]
        %v933 = vld [vmem:[%s922 + $0x50] sm:$0xff]
        %v934 = vld [vmem:[%s922 + $0x58] sm:$0xff]
        %v935 = vld [vmem:[%s922 + $0x60] sm:$0xff]
        %v936 = vld [vmem:[%s922 + $0x68] sm:$0xff]
        %v937 = vld [vmem:[%s922 + $0x70] sm:$0xff]
        %v938 = vld [vmem:[%s922 + $0x78] sm:$0xff]
        %s939 = scalar_lea.vmem %s1, 80
        %v940 = vld [vmem:[%s939] sm:$0xff]
        %v941 = vld [vmem:[%s939 + $0x8] sm:$0xf]
        %v943 = vsel %vm226, %v923, 0
        %v946 = vsel %vm226, %v924, 0
        %v949 = vsel %vm226, %v925, 0
        %v952 = vsel %vm226, %v926, 0
        %v955 = vsel %vm226, %v927, 0
        %v958 = vsel %vm226, %v928, 0
        %v961 = vsel %vm226, %v929, 0
        %v964 = vsel %vm226, %v930, 0
        %v967 = vsel %vm226, %v931, 0
        %v970 = vsel %vm226, %v932, 0
        %v973 = vsel %vm226, %v933, 0
        %v976 = vsel %vm226, %v934, 0
        %v979 = vsel %vm226, %v935, 0
        %v982 = vsel %vm226, %v936, 0
        %v985 = vsel %vm226, %v937, 0
        %v988 = vsel %vm226, %v938, 0
        %v991 = vsel %vm275, %v941, 0
        %993 = vmatpush.msra.mxu0 0.0
        %994 = vmatpush.msra.mxu0 0.0
        %995 = vmatpush.msra.mxu0 0.0
        %996 = vmatpush.msra.mxu0 0.0
        %997 = vmatpush.msra.mxu0 0.0
        %998 = vmatpush.msra.mxu0 0.0
        %999 = vmatpush.msra.mxu0 0.0
        %1000 = vmatpush.msra.mxu0 0.0
        %1001 = vmatpush.msra.mxu0 0.0
        %1002 = vmatpush.msra.mxu0 0.0
        %1003 = vmatpush.msra.mxu0 0.0
        %1004 = vmatpush.msra.mxu0 0.0
        %1005 = vmatpush.msra.mxu0 0.0
        %1006 = vmatpush.msra.mxu0 0.0
        %1007 = vmatpush.msra.mxu0 %v991
        %1008 = vmatpush.msra.mxu0 %v940
        %1009 = vmatmul.f32.gmra.mxu0 %v943
        %v1010 = vpop.f32.mrf.mxu0
        %v1011 = vadd.f32 0.0, %v1010
        %1012 = vmatmul.f32.gmra.mxu0 %v946
        %v1013 = vpop.f32.mrf.mxu0
        %v1014 = vadd.f32 0.0, %v1013
        %1015 = vmatmul.f32.gmra.mxu0 %v949
        %v1016 = vpop.f32.mrf.mxu0
        %v1017 = vadd.f32 0.0, %v1016
        %1018 = vmatmul.f32.gmra.mxu0 %v952
        %v1019 = vpop.f32.mrf.mxu0
        %v1020 = vadd.f32 0.0, %v1019
        %1021 = vmatmul.f32.gmra.mxu0 %v955
        %v1022 = vpop.f32.mrf.mxu0
        %v1023 = vadd.f32 0.0, %v1022
        %1024 = vmatmul.f32.gmra.mxu0 %v958
        %v1025 = vpop.f32.mrf.mxu0
        %v1026 = vadd.f32 0.0, %v1025
        %1027 = vmatmul.f32.gmra.mxu0 %v961
        %v1028 = vpop.f32.mrf.mxu0
        %v1029 = vadd.f32 0.0, %v1028
        %1030 = vmatmul.f32.gmra.mxu0 %v964
        %v1031 = vpop.f32.mrf.mxu0
        %v1032 = vadd.f32 0.0, %v1031
        %1033 = vmatmul.f32.gmra.mxu0 %v967
        %v1034 = vpop.f32.mrf.mxu0
        %v1035 = vadd.f32 0.0, %v1034
        %1036 = vmatmul.f32.gmra.mxu0 %v970
        %v1037 = vpop.f32.mrf.mxu0
        %v1038 = vadd.f32 0.0, %v1037
        %1039 = vmatmul.f32.gmra.mxu0 %v973
        %v1040 = vpop.f32.mrf.mxu0
        %v1041 = vadd.f32 0.0, %v1040
        %1042 = vmatmul.f32.gmra.mxu0 %v976
        %v1043 = vpop.f32.mrf.mxu0
        %v1044 = vadd.f32 0.0, %v1043
        %1045 = vmatmul.f32.gmra.mxu0 %v979
        %v1046 = vpop.f32.mrf.mxu0
        %v1047 = vadd.f32 0.0, %v1046
        %1048 = vmatmul.f32.gmra.mxu0 %v982
        %v1049 = vpop.f32.mrf.mxu0
        %v1050 = vadd.f32 0.0, %v1049
        %1051 = vmatmul.f32.gmra.mxu0 %v985
        %v1052 = vpop.f32.mrf.mxu0
        %v1053 = vadd.f32 0.0, %v1052
        %1054 = vmatmul.f32.gmra.mxu0 %v988
        %v1055 = vpop.f32.mrf.mxu0
        %v1056 = vadd.f32 0.0, %v1055
        %1057 = vdwg.mxu0
        %v1058 = vadd.f32 %v904, %v1011
        %v1059 = vadd.f32 %v905, %v1014
        %v1060 = vadd.f32 %v906, %v1017
        %v1061 = vadd.f32 %v907, %v1020
        %v1062 = vadd.f32 %v908, %v1023
        %v1063 = vadd.f32 %v909, %v1026
        %v1064 = vadd.f32 %v910, %v1029
        %v1065 = vadd.f32 %v911, %v1032
        %v1066 = vadd.f32 %v912, %v1035
        %v1067 = vadd.f32 %v913, %v1038
        %v1068 = vadd.f32 %v914, %v1041
        %v1069 = vadd.f32 %v915, %v1044
        %v1070 = vadd.f32 %v916, %v1047
        %v1071 = vadd.f32 %v917, %v1050
        %v1072 = vadd.f32 %v918, %v1053
        %v1073 = vadd.f32 %v919, %v1056
        %s1074 = sadd.s32 %s184, 768
        %s1075 = scalar_lea.vmem %s182, %s1074
        %v1076 = vld [vmem:[%s1075] sm:$0xff]
        %v1077 = vld [vmem:[%s1075 + $0x8] sm:$0xff]
        %v1078 = vld [vmem:[%s1075 + $0x10] sm:$0xff]
        %v1079 = vld [vmem:[%s1075 + $0x18] sm:$0xff]
        %v1080 = vld [vmem:[%s1075 + $0x20] sm:$0xff]
        %v1081 = vld [vmem:[%s1075 + $0x28] sm:$0xff]
        %v1082 = vld [vmem:[%s1075 + $0x30] sm:$0xff]
        %v1083 = vld [vmem:[%s1075 + $0x38] sm:$0xff]
        %v1084 = vld [vmem:[%s1075 + $0x40] sm:$0xff]
        %v1085 = vld [vmem:[%s1075 + $0x48] sm:$0xff]
        %v1086 = vld [vmem:[%s1075 + $0x50] sm:$0xff]
        %v1087 = vld [vmem:[%s1075 + $0x58] sm:$0xff]
        %v1088 = vld [vmem:[%s1075 + $0x60] sm:$0xff]
        %v1089 = vld [vmem:[%s1075 + $0x68] sm:$0xff]
        %v1090 = vld [vmem:[%s1075 + $0x70] sm:$0xff]
        %v1091 = vld [vmem:[%s1075 + $0x78] sm:$0xff]
        %s1092 = scalar_lea.vmem %s1, 96
        %v1093 = vld [vmem:[%s1092] sm:$0xff]
        %v1094 = vld [vmem:[%s1092 + $0x8] sm:$0xf]
        %v1096 = vsel %vm226, %v1076, 0
        %v1099 = vsel %vm226, %v1077, 0
        %v1102 = vsel %vm226, %v1078, 0
        %v1105 = vsel %vm226, %v1079, 0
        %v1108 = vsel %vm226, %v1080, 0
        %v1111 = vsel %vm226, %v1081, 0
        %v1114 = vsel %vm226, %v1082, 0
        %v1117 = vsel %vm226, %v1083, 0
        %v1120 = vsel %vm226, %v1084, 0
        %v1123 = vsel %vm226, %v1085, 0
        %v1126 = vsel %vm226, %v1086, 0
        %v1129 = vsel %vm226, %v1087, 0
        %v1132 = vsel %vm226, %v1088, 0
        %v1135 = vsel %vm226, %v1089, 0
        %v1138 = vsel %vm226, %v1090, 0
        %v1141 = vsel %vm226, %v1091, 0
        %v1144 = vsel %vm275, %v1094, 0
        %1146 = vmatpush.msra.mxu0 0.0
        %1147 = vmatpush.msra.mxu0 0.0
        %1148 = vmatpush.msra.mxu0 0.0
        %1149 = vmatpush.msra.mxu0 0.0
        %1150 = vmatpush.msra.mxu0 0.0
        %1151 = vmatpush.msra.mxu0 0.0
        %1152 = vmatpush.msra.mxu0 0.0
        %1153 = vmatpush.msra.mxu0 0.0
        %1154 = vmatpush.msra.mxu0 0.0
        %1155 = vmatpush.msra.mxu0 0.0
        %1156 = vmatpush.msra.mxu0 0.0
        %1157 = vmatpush.msra.mxu0 0.0
        %1158 = vmatpush.msra.mxu0 0.0
        %1159 = vmatpush.msra.mxu0 0.0
        %1160 = vmatpush.msra.mxu0 %v1144
        %1161 = vmatpush.msra.mxu0 %v1093
        %1162 = vmatmul.f32.gmra.mxu0 %v1096
        %v1163 = vpop.f32.mrf.mxu0
        %v1164 = vadd.f32 0.0, %v1163
        %1165 = vmatmul.f32.gmra.mxu0 %v1099
        %v1166 = vpop.f32.mrf.mxu0
        %v1167 = vadd.f32 0.0, %v1166
        %1168 = vmatmul.f32.gmra.mxu0 %v1102
        %v1169 = vpop.f32.mrf.mxu0
        %v1170 = vadd.f32 0.0, %v1169
        %1171 = vmatmul.f32.gmra.mxu0 %v1105
        %v1172 = vpop.f32.mrf.mxu0
        %v1173 = vadd.f32 0.0, %v1172
        %1174 = vmatmul.f32.gmra.mxu0 %v1108
        %v1175 = vpop.f32.mrf.mxu0
        %v1176 = vadd.f32 0.0, %v1175
        %1177 = vmatmul.f32.gmra.mxu0 %v1111
        %v1178 = vpop.f32.mrf.mxu0
        %v1179 = vadd.f32 0.0, %v1178
        %1180 = vmatmul.f32.gmra.mxu0 %v1114
        %v1181 = vpop.f32.mrf.mxu0
        %v1182 = vadd.f32 0.0, %v1181
        %1183 = vmatmul.f32.gmra.mxu0 %v1117
        %v1184 = vpop.f32.mrf.mxu0
        %v1185 = vadd.f32 0.0, %v1184
        %1186 = vmatmul.f32.gmra.mxu0 %v1120
        %v1187 = vpop.f32.mrf.mxu0
        %v1188 = vadd.f32 0.0, %v1187
        %1189 = vmatmul.f32.gmra.mxu0 %v1123
        %v1190 = vpop.f32.mrf.mxu0
        %v1191 = vadd.f32 0.0, %v1190
        %1192 = vmatmul.f32.gmra.mxu0 %v1126
        %v1193 = vpop.f32.mrf.mxu0
        %v1194 = vadd.f32 0.0, %v1193
        %1195 = vmatmul.f32.gmra.mxu0 %v1129
        %v1196 = vpop.f32.mrf.mxu0
        %v1197 = vadd.f32 0.0, %v1196
        %1198 = vmatmul.f32.gmra.mxu0 %v1132
        %v1199 = vpop.f32.mrf.mxu0
        %v1200 = vadd.f32 0.0, %v1199
        %1201 = vmatmul.f32.gmra.mxu0 %v1135
        %v1202 = vpop.f32.mrf.mxu0
        %v1203 = vadd.f32 0.0, %v1202
        %1204 = vmatmul.f32.gmra.mxu0 %v1138
        %v1205 = vpop.f32.mrf.mxu0
        %v1206 = vadd.f32 0.0, %v1205
        %1207 = vmatmul.f32.gmra.mxu0 %v1141
        %v1208 = vpop.f32.mrf.mxu0
        %v1209 = vadd.f32 0.0, %v1208
        %1210 = vdwg.mxu0
        %v1211 = vadd.f32 %v1058, %v1164
        %v1212 = vadd.f32 %v1059, %v1167
        %v1213 = vadd.f32 %v1060, %v1170
        %v1214 = vadd.f32 %v1061, %v1173
        %v1215 = vadd.f32 %v1062, %v1176
        %v1216 = vadd.f32 %v1063, %v1179
        %v1217 = vadd.f32 %v1064, %v1182
        %v1218 = vadd.f32 %v1065, %v1185
        %v1219 = vadd.f32 %v1066, %v1188
        %v1220 = vadd.f32 %v1067, %v1191
        %v1221 = vadd.f32 %v1068, %v1194
        %v1222 = vadd.f32 %v1069, %v1197
        %v1223 = vadd.f32 %v1070, %v1200
        %v1224 = vadd.f32 %v1071, %v1203
        %v1225 = vadd.f32 %v1072, %v1206
        %v1226 = vadd.f32 %v1073, %v1209
        %s1227 = sadd.s32 %s205, 768
        %s1228 = scalar_lea.vmem %s182, %s1227
        %v1229 = vld [vmem:[%s1228] sm:$0xff]
        %v1230 = vld [vmem:[%s1228 + $0x8] sm:$0xff]
        %v1231 = vld [vmem:[%s1228 + $0x10] sm:$0xff]
        %v1232 = vld [vmem:[%s1228 + $0x18] sm:$0xff]
        %v1233 = vld [vmem:[%s1228 + $0x20] sm:$0xff]
        %v1234 = vld [vmem:[%s1228 + $0x28] sm:$0xff]
        %v1235 = vld [vmem:[%s1228 + $0x30] sm:$0xff]
        %v1236 = vld [vmem:[%s1228 + $0x38] sm:$0xff]
        %v1237 = vld [vmem:[%s1228 + $0x40] sm:$0xff]
        %v1238 = vld [vmem:[%s1228 + $0x48] sm:$0xff]
        %v1239 = vld [vmem:[%s1228 + $0x50] sm:$0xff]
        %v1240 = vld [vmem:[%s1228 + $0x58] sm:$0xff]
        %v1241 = vld [vmem:[%s1228 + $0x60] sm:$0xff]
        %v1242 = vld [vmem:[%s1228 + $0x68] sm:$0xff]
        %v1243 = vld [vmem:[%s1228 + $0x70] sm:$0xff]
        %v1244 = vld [vmem:[%s1228 + $0x78] sm:$0xff]
        %s1245 = scalar_lea.vmem %s1, 112
        %v1246 = vld [vmem:[%s1245] sm:$0xff]
        %v1247 = vld [vmem:[%s1245 + $0x8] sm:$0xf]
        %v1249 = vsel %vm226, %v1229, 0
        %v1252 = vsel %vm226, %v1230, 0
        %v1255 = vsel %vm226, %v1231, 0
        %v1258 = vsel %vm226, %v1232, 0
        %v1261 = vsel %vm226, %v1233, 0
        %v1264 = vsel %vm226, %v1234, 0
        %v1267 = vsel %vm226, %v1235, 0
        %v1270 = vsel %vm226, %v1236, 0
        %v1273 = vsel %vm226, %v1237, 0
        %v1276 = vsel %vm226, %v1238, 0
        %v1279 = vsel %vm226, %v1239, 0
        %v1282 = vsel %vm226, %v1240, 0
        %v1285 = vsel %vm226, %v1241, 0
        %v1288 = vsel %vm226, %v1242, 0
        %v1291 = vsel %vm226, %v1243, 0
        %v1294 = vsel %vm226, %v1244, 0
        %v1297 = vsel %vm275, %v1247, 0
        %1299 = vmatpush.msra.mxu0 0.0
        %1300 = vmatpush.msra.mxu0 0.0
        %1301 = vmatpush.msra.mxu0 0.0
        %1302 = vmatpush.msra.mxu0 0.0
        %1303 = vmatpush.msra.mxu0 0.0
        %1304 = vmatpush.msra.mxu0 0.0
        %1305 = vmatpush.msra.mxu0 0.0
        %1306 = vmatpush.msra.mxu0 0.0
        %1307 = vmatpush.msra.mxu0 0.0
        %1308 = vmatpush.msra.mxu0 0.0
        %1309 = vmatpush.msra.mxu0 0.0
        %1310 = vmatpush.msra.mxu0 0.0
        %1311 = vmatpush.msra.mxu0 0.0
        %1312 = vmatpush.msra.mxu0 0.0
        %1313 = vmatpush.msra.mxu0 %v1297
        %1314 = vmatpush.msra.mxu0 %v1246
        %1315 = vmatmul.f32.gmra.mxu0 %v1249
        %v1316 = vpop.f32.mrf.mxu0
        %v1317 = vadd.f32 0.0, %v1316
        %1318 = vmatmul.f32.gmra.mxu0 %v1252
        %v1319 = vpop.f32.mrf.mxu0
        %v1320 = vadd.f32 0.0, %v1319
        %1321 = vmatmul.f32.gmra.mxu0 %v1255
        %v1322 = vpop.f32.mrf.mxu0
        %v1323 = vadd.f32 0.0, %v1322
        %1324 = vmatmul.f32.gmra.mxu0 %v1258
        %v1325 = vpop.f32.mrf.mxu0
        %v1326 = vadd.f32 0.0, %v1325
        %1327 = vmatmul.f32.gmra.mxu0 %v1261
        %v1328 = vpop.f32.mrf.mxu0
        %v1329 = vadd.f32 0.0, %v1328
        %1330 = vmatmul.f32.gmra.mxu0 %v1264
        %v1331 = vpop.f32.mrf.mxu0
        %v1332 = vadd.f32 0.0, %v1331
        %1333 = vmatmul.f32.gmra.mxu0 %v1267
        %v1334 = vpop.f32.mrf.mxu0
        %v1335 = vadd.f32 0.0, %v1334
        %1336 = vmatmul.f32.gmra.mxu0 %v1270
        %v1337 = vpop.f32.mrf.mxu0
        %v1338 = vadd.f32 0.0, %v1337
        %1339 = vmatmul.f32.gmra.mxu0 %v1273
        %v1340 = vpop.f32.mrf.mxu0
        %v1341 = vadd.f32 0.0, %v1340
        %1342 = vmatmul.f32.gmra.mxu0 %v1276
        %v1343 = vpop.f32.mrf.mxu0
        %v1344 = vadd.f32 0.0, %v1343
        %1345 = vmatmul.f32.gmra.mxu0 %v1279
        %v1346 = vpop.f32.mrf.mxu0
        %v1347 = vadd.f32 0.0, %v1346
        %1348 = vmatmul.f32.gmra.mxu0 %v1282
        %v1349 = vpop.f32.mrf.mxu0
        %v1350 = vadd.f32 0.0, %v1349
        %1351 = vmatmul.f32.gmra.mxu0 %v1285
        %v1352 = vpop.f32.mrf.mxu0
        %v1353 = vadd.f32 0.0, %v1352
        %1354 = vmatmul.f32.gmra.mxu0 %v1288
        %v1355 = vpop.f32.mrf.mxu0
        %v1356 = vadd.f32 0.0, %v1355
        %1357 = vmatmul.f32.gmra.mxu0 %v1291
        %v1358 = vpop.f32.mrf.mxu0
        %v1359 = vadd.f32 0.0, %v1358
        %1360 = vmatmul.f32.gmra.mxu0 %v1294
        %v1361 = vpop.f32.mrf.mxu0
        %v1362 = vadd.f32 0.0, %v1361
        %1363 = vdwg.mxu0
        %v1364 = vadd.f32 %v1211, %v1317
        %v1365 = vadd.f32 %v1212, %v1320
        %v1366 = vadd.f32 %v1213, %v1323
        %v1367 = vadd.f32 %v1214, %v1326
        %v1368 = vadd.f32 %v1215, %v1329
        %v1369 = vadd.f32 %v1216, %v1332
        %v1370 = vadd.f32 %v1217, %v1335
        %v1371 = vadd.f32 %v1218, %v1338
        %v1372 = vadd.f32 %v1219, %v1341
        %v1373 = vadd.f32 %v1220, %v1344
        %v1374 = vadd.f32 %v1221, %v1347
        %v1375 = vadd.f32 %v1222, %v1350
        %v1376 = vadd.f32 %v1223, %v1353
        %v1377 = vadd.f32 %v1224, %v1356
        %v1378 = vadd.f32 %v1225, %v1359
        %v1379 = vadd.f32 %v1226, %v1362
        %s1380 = sadd.s32 %s184, 128
        %s1381 = sadd.s32 %s1380, 768
        %s1382 = scalar_lea.vmem %s182, %s1381
        %v1383 = vld [vmem:[%s1382] sm:$0xff]
        %v1384 = vld [vmem:[%s1382 + $0x8] sm:$0xff]
        %v1385 = vld [vmem:[%s1382 + $0x10] sm:$0xff]
        %v1386 = vld [vmem:[%s1382 + $0x18] sm:$0xff]
        %v1387 = vld [vmem:[%s1382 + $0x20] sm:$0xff]
        %v1388 = vld [vmem:[%s1382 + $0x28] sm:$0xff]
        %v1389 = vld [vmem:[%s1382 + $0x30] sm:$0xff]
        %v1390 = vld [vmem:[%s1382 + $0x38] sm:$0xff]
        %v1391 = vld [vmem:[%s1382 + $0x40] sm:$0xff]
        %v1392 = vld [vmem:[%s1382 + $0x48] sm:$0xff]
        %v1393 = vld [vmem:[%s1382 + $0x50] sm:$0xff]
        %v1394 = vld [vmem:[%s1382 + $0x58] sm:$0xff]
        %v1395 = vld [vmem:[%s1382 + $0x60] sm:$0xff]
        %v1396 = vld [vmem:[%s1382 + $0x68] sm:$0xff]
        %v1397 = vld [vmem:[%s1382 + $0x70] sm:$0xff]
        %v1398 = vld [vmem:[%s1382 + $0x78] sm:$0xff]
        %s1399 = scalar_lea.vmem %s1, 128
        %v1400 = vld [vmem:[%s1399] sm:$0xff]
        %v1401 = vld [vmem:[%s1399 + $0x8] sm:$0xf]
        %v1403 = vsel %vm226, %v1383, 0
        %v1406 = vsel %vm226, %v1384, 0
        %v1409 = vsel %vm226, %v1385, 0
        %v1412 = vsel %vm226, %v1386, 0
        %v1415 = vsel %vm226, %v1387, 0
        %v1418 = vsel %vm226, %v1388, 0
        %v1421 = vsel %vm226, %v1389, 0
        %v1424 = vsel %vm226, %v1390, 0
        %v1427 = vsel %vm226, %v1391, 0
        %v1430 = vsel %vm226, %v1392, 0
        %v1433 = vsel %vm226, %v1393, 0
        %v1436 = vsel %vm226, %v1394, 0
        %v1439 = vsel %vm226, %v1395, 0
        %v1442 = vsel %vm226, %v1396, 0
        %v1445 = vsel %vm226, %v1397, 0
        %v1448 = vsel %vm226, %v1398, 0
        %v1451 = vsel %vm275, %v1401, 0
        %1453 = vmatpush.msra.mxu0 0.0
        %1454 = vmatpush.msra.mxu0 0.0
        %1455 = vmatpush.msra.mxu0 0.0
        %1456 = vmatpush.msra.mxu0 0.0
        %1457 = vmatpush.msra.mxu0 0.0
        %1458 = vmatpush.msra.mxu0 0.0
        %1459 = vmatpush.msra.mxu0 0.0
        %1460 = vmatpush.msra.mxu0 0.0
        %1461 = vmatpush.msra.mxu0 0.0
        %1462 = vmatpush.msra.mxu0 0.0
        %1463 = vmatpush.msra.mxu0 0.0
        %1464 = vmatpush.msra.mxu0 0.0
        %1465 = vmatpush.msra.mxu0 0.0
        %1466 = vmatpush.msra.mxu0 0.0
        %1467 = vmatpush.msra.mxu0 %v1451
        %1468 = vmatpush.msra.mxu0 %v1400
        %1469 = vmatmul.f32.gmra.mxu0 %v1403
        %v1470 = vpop.f32.mrf.mxu0
        %v1471 = vadd.f32 0.0, %v1470
        %1472 = vmatmul.f32.gmra.mxu0 %v1406
        %v1473 = vpop.f32.mrf.mxu0
        %v1474 = vadd.f32 0.0, %v1473
        %1475 = vmatmul.f32.gmra.mxu0 %v1409
        %v1476 = vpop.f32.mrf.mxu0
        %v1477 = vadd.f32 0.0, %v1476
        %1478 = vmatmul.f32.gmra.mxu0 %v1412
        %v1479 = vpop.f32.mrf.mxu0
        %v1480 = vadd.f32 0.0, %v1479
        %1481 = vmatmul.f32.gmra.mxu0 %v1415
        %v1482 = vpop.f32.mrf.mxu0
        %v1483 = vadd.f32 0.0, %v1482
        %1484 = vmatmul.f32.gmra.mxu0 %v1418
        %v1485 = vpop.f32.mrf.mxu0
        %v1486 = vadd.f32 0.0, %v1485
        %1487 = vmatmul.f32.gmra.mxu0 %v1421
        %v1488 = vpop.f32.mrf.mxu0
        %v1489 = vadd.f32 0.0, %v1488
        %1490 = vmatmul.f32.gmra.mxu0 %v1424
        %v1491 = vpop.f32.mrf.mxu0
        %v1492 = vadd.f32 0.0, %v1491
        %1493 = vmatmul.f32.gmra.mxu0 %v1427
        %v1494 = vpop.f32.mrf.mxu0
        %v1495 = vadd.f32 0.0, %v1494
        %1496 = vmatmul.f32.gmra.mxu0 %v1430
        %v1497 = vpop.f32.mrf.mxu0
        %v1498 = vadd.f32 0.0, %v1497
        %1499 = vmatmul.f32.gmra.mxu0 %v1433
        %v1500 = vpop.f32.mrf.mxu0
        %v1501 = vadd.f32 0.0, %v1500
        %1502 = vmatmul.f32.gmra.mxu0 %v1436
        %v1503 = vpop.f32.mrf.mxu0
        %v1504 = vadd.f32 0.0, %v1503
        %1505 = vmatmul.f32.gmra.mxu0 %v1439
        %v1506 = vpop.f32.mrf.mxu0
        %v1507 = vadd.f32 0.0, %v1506
        %1508 = vmatmul.f32.gmra.mxu0 %v1442
        %v1509 = vpop.f32.mrf.mxu0
        %v1510 = vadd.f32 0.0, %v1509
        %1511 = vmatmul.f32.gmra.mxu0 %v1445
        %v1512 = vpop.f32.mrf.mxu0
        %v1513 = vadd.f32 0.0, %v1512
        %1514 = vmatmul.f32.gmra.mxu0 %v1448
        %v1515 = vpop.f32.mrf.mxu0
        %v1516 = vadd.f32 0.0, %v1515
        %1517 = vdwg.mxu0
        %v1518 = vadd.f32 %v1364, %v1471
        %v1519 = vadd.f32 %v1365, %v1474
        %v1520 = vadd.f32 %v1366, %v1477
        %v1521 = vadd.f32 %v1367, %v1480
        %v1522 = vadd.f32 %v1368, %v1483
        %v1523 = vadd.f32 %v1369, %v1486
        %v1524 = vadd.f32 %v1370, %v1489
        %v1525 = vadd.f32 %v1371, %v1492
        %v1526 = vadd.f32 %v1372, %v1495
        %v1527 = vadd.f32 %v1373, %v1498
        %v1528 = vadd.f32 %v1374, %v1501
        %v1529 = vadd.f32 %v1375, %v1504
        %v1530 = vadd.f32 %v1376, %v1507
        %v1531 = vadd.f32 %v1377, %v1510
        %v1532 = vadd.f32 %v1378, %v1513
        %v1533 = vadd.f32 %v1379, %v1516
        %v1534 = vld [vmem:[%s2] sm:$0x1]
        %v1536 = vperm.slane %v1534, 0
        %v1538 = vadd.f32 %v1518, %v1536
        %v1539 = vadd.f32 %v1519, %v1536
        %v1540 = vadd.f32 %v1520, %v1536
        %v1541 = vadd.f32 %v1521, %v1536
        %v1542 = vadd.f32 %v1522, %v1536
        %v1543 = vadd.f32 %v1523, %v1536
        %v1544 = vadd.f32 %v1524, %v1536
        %v1545 = vadd.f32 %v1525, %v1536
        %v1546 = vadd.f32 %v1526, %v1536
        %v1547 = vadd.f32 %v1527, %v1536
        %v1548 = vadd.f32 %v1528, %v1536
        %v1549 = vadd.f32 %v1529, %v1536
        %v1550 = vadd.f32 %v1530, %v1536
        %v1551 = vadd.f32 %v1531, %v1536
        %v1552 = vadd.f32 %v1532, %v1536
        %v1553 = vadd.f32 %v1533, %v1536
        %1554 = vst [vmem:[%s177] sm:$0xff] %v1538
        %1555 = vst [vmem:[%s177 + $0x8] sm:$0xff] %v1539
        %1556 = vst [vmem:[%s177 + $0x10] sm:$0xff] %v1540
        %1557 = vst [vmem:[%s177 + $0x18] sm:$0xff] %v1541
        %1558 = vst [vmem:[%s177 + $0x20] sm:$0xff] %v1542
        %1559 = vst [vmem:[%s177 + $0x28] sm:$0xff] %v1543
        %1560 = vst [vmem:[%s177 + $0x30] sm:$0xff] %v1544
        %1561 = vst [vmem:[%s177 + $0x38] sm:$0xff] %v1545
        %1562 = vst [vmem:[%s177 + $0x40] sm:$0xff] %v1546
        %1563 = vst [vmem:[%s177 + $0x48] sm:$0xff] %v1547
        %1564 = vst [vmem:[%s177 + $0x50] sm:$0xff] %v1548
        %1565 = vst [vmem:[%s177 + $0x58] sm:$0xff] %v1549
        %1566 = vst [vmem:[%s177 + $0x60] sm:$0xff] %v1550
        %1567 = vst [vmem:[%s177 + $0x68] sm:$0xff] %v1551
        %1568 = vst [vmem:[%s177 + $0x70] sm:$0xff] %v1552
        %1569 = vst [vmem:[%s177 + $0x78] sm:$0xff] %v1553
        %s1570 = sand.u32 %s107, 1
        %s1571 = scalar_lea.sflag [#allocation3], %s1570
        %s1572 = sand.u32 %s107, 1
        %s1573 = smul.addr %s1572, 128
        %s1574 = scalar_lea.vmem [#allocation2], %s1573
        // Predicated region
        $region33: #{tpu_custom_call.1} parent=31 // pred_check
          %p1575 = pneg %p117
        $region34: #{tpu_custom_call.1} parent=31 // pred_check_branch
          %1577 = sbr.rel (%p1575) target = $region36
        $region35: #{tpu_custom_call.1} parent=31 // pred_region
          %s1578 = smul.u32 16, %s22
          %1580 = vsyncadd %s1571, 0
          %s1581 = smul.addr %s21, 32
          %s1582 = sadd.s32 %s1578, %s1581
          %s1583 = smul.addr %s1582, 8
          %s1584 = scalar_lea.hbm %s3, %s1583
          %s1585 = sshll.u32 %s1574, 4
          %s1586 = int_to_ptr.vmem [resolvable:$true] %s1585
          %s1587 = sshll.u32 %s1584, 4
          %s1588 = int_to_ptr.hbm [resolvable:$true] %s1587
          %1593 = dma.vmem_to_hbm [thread:$0]  %s1586, 2048, %s1588, %s1571, 128, 128, 8
        $region36: #{tpu_custom_call.1} parent=31 // pred_fallthru
          _
      $region32: #{tpu_custom_call.1} parent=5 // pred_fallthru
        _
      %p1594 = scmp.le.s32.totalorder 2, %s12
      // Predicated region
      $region37: #{tpu_custom_call.1} parent=5 // pred_check
        %p1595 = pneg %p1594
      $region38: #{tpu_custom_call.1} parent=5 // pred_check_branch
        %1597 = sbr.rel (%p1595) target = $region40
      $region39: #{tpu_custom_call.1} parent=5 // pred_region
        %s1598 = ssub.s32 %s12, 2
        // Predicated region
        $region41: #{tpu_custom_call.1} parent=39 // pred_check
          %p1599 = pneg %p123
        $region42: #{tpu_custom_call.1} parent=39 // pred_check_branch
          %1601 = sbr.rel (%p1599) target = $region44
        $region43: #{tpu_custom_call.1} parent=39 // pred_region
          %s1602 = sand.u32 %s108, 1
          %s1603 = scalar_lea.sflag [#allocation3], %s1602
          %s1604 = sand.u32 %s108, 1
          %s1605 = smul.addr %s1604, 128
          %s1606 = scalar_lea.vmem [#allocation2], %s1605
          %1608 = dma.done %s1603, 2048
        $region44: #{tpu_custom_call.1} parent=39 // pred_fallthru
          _
      $region40: #{tpu_custom_call.1} parent=5 // pred_fallthru
        _
    $region6: #{tpu_custom_call.1} parent=1 // loop_footer
      %s16 = sadd.s32 1, %s12
    $region7: #{tpu_custom_call.1} parent=1 // loop_footer_branch
      %11 = sbr.rel target = $region3
    $region8: #{tpu_custom_call.1} parent=1 // loop_exit
      _
    %1609 = vsyncpa [#allocation3], 1
    %s1610 = scalar_lea.sflag [#allocation3], 1
    %1611 = vsyncpa %s1610, 1

</llo_original>
